<compile_context>
chip_gen: v6e
topology: v6e:2x2x1
jax: 0.10.0
libtpu: 0.0.40
codegen_flags: <defaults>
</compile_context>

<pallas_src>
import functools
import math

import jax
import jax.numpy as jnp
import numpy as np
from jax.experimental import pallas as pl
from jax.experimental.pallas import tpu as pltpu


# ----------------------------------------------------------------------------
# Kernel helpers
# ----------------------------------------------------------------------------
def _bn_lane_dense(acc, pool, gamma_t, beta_t, count, eps=1e-5):
    """Training-mode BatchNorm in lane-dense layout (lane index = x*C + c).

    Row-reduce FIRST (cheap VPU reduction), then apply the channel-pool
    matmul on a single row: (1, L) @ (L, L).  `pool` is row-invariant so this
    is algebraically identical to pooling before the reduction, but R x
    cheaper on the MXU.  The affine tail is fused into one FMA.
    """
    s1 = jnp.sum(acc, axis=0, keepdims=True)                           # (1, L)
    mean_t = jnp.dot(s1, pool, preferred_element_type=jnp.float32) / count
    c = acc - mean_t
    s2 = jnp.sum(c * c, axis=0, keepdims=True)                         # (1, L)
    var_t = jnp.dot(s2, pool, preferred_element_type=jnp.float32) / count
    scale = jax.lax.rsqrt(var_t + eps) * gamma_t
    return c * scale + beta_t


def fused_unet_block_kernel(*refs, N, H, W, Cin, Co, pad, batch_norm):
    if batch_norm:
        (x_ref, w1_ref, b1_ref, g1_ref, be1_ref, p1_ref,
         w2_ref, b2_ref, g2_ref, be2_ref, p2_ref,
         o_ref, xpad_ref, midpad_ref) = refs
    else:
        (x_ref, w1_ref, b1_ref, w2_ref, b2_ref,
         o_ref, xpad_ref, midpad_ref) = refs

    Hp1 = H + 2 * pad
    H1, W1 = Hp1 - 2, W + 2 * pad - 2
    Hp2 = H1 + 2 * pad
    H2, W2 = Hp2 - 2, W1 + 2 * pad - 2
    K1, L1 = W * Cin, W1 * Co
    K2, L2 = W1 * Co, W2 * Co

    # -------- Stage 1: Conv3x3 + bias + ReLU (+ BN) --------
    # W padding lives in the banded weights; only H halo rows are zeroed.
    if pad:
        zrow1 = jnp.zeros((N, pad, K1), jnp.float32)
        xpad_ref[:, :pad, :] = zrow1
        xpad_ref[:, pad + H:, :] = zrow1
    xpad_ref[:, pad:pad + H, :] = x_ref[...]

    xp = xpad_ref[...]                       # single VMEM read of the slab
    acc1 = jnp.zeros((N * H1, L1), jnp.float32)
    for dy in range(3):                      # 3 banded matmuls, K = W*Cin
        xs = xp[:, dy:dy + H1, :].reshape(N * H1, K1).astype(jnp.bfloat16)
        acc1 += jnp.dot(xs, w1_ref[dy], preferred_element_type=jnp.float32)
    acc1 = jnp.maximum(acc1 + b1_ref[...], 0.0)
    if batch_norm:
        acc1 = _bn_lane_dense(acc1, p1_ref[...], g1_ref[...], be1_ref[...],
                              count=N * H1 * W1)

    # -------- Stage 2: Conv3x3 + bias + ReLU (+ BN) --------
    # Stage-1 output never leaves VMEM.
    if pad:
        zrow2 = jnp.zeros((N, pad, K2), jnp.float32)
        midpad_ref[:, :pad, :] = zrow2
        midpad_ref[:, pad + H1:, :] = zrow2
    midpad_ref[:, pad:pad + H1, :] = acc1.reshape(N, H1, L1)

    mp = midpad_ref[...]
    acc2 = jnp.zeros((N * H2, L2), jnp.float32)
    for dy in range(3):
        ms = mp[:, dy:dy + H2, :].reshape(N * H2, K2).astype(jnp.bfloat16)
        acc2 += jnp.dot(ms, w2_ref[dy], preferred_element_type=jnp.float32)
    acc2 = jnp.maximum(acc2 + b2_ref[...], 0.0)
    if batch_norm:
        acc2 = _bn_lane_dense(acc2, p2_ref[...], g2_ref[...], be2_ref[...],
                              count=N * H2 * W2)

    # Lane-dense output slab (N*H2, W2*Co) == row-major NHWC.
    o_ref[...] = acc2


# ----------------------------------------------------------------------------
# Wrapper-side (XLA) parameter preprocessing
# ----------------------------------------------------------------------------
def _banded_weights(w_oihw, w_in, w_out, pad, dtype=jnp.bfloat16):
    """(Co, Cin, 3, 3) conv weights -> (3, w_in*Cin, w_out*Co) banded weights.

    W-direction zero padding is folded into the band:
      B[ky][xi*Cin + ci, ox*Co + co] = w[co, ci, ky, xi - ox + pad]
                                       if 0 <= xi - ox + pad <= 2 else 0
    """
    Co, Cin = w_oihw.shape[0], w_oihw.shape[1]
    wt = jnp.transpose(w_oihw, (2, 3, 1, 0))            # (ky, kx, Cin, Co)
    xi = jnp.arange(w_in)[:, None]                      # input column index
    ox = jnp.arange(w_out)[None, :]                     # output column index
    kx = xi - ox + pad
    valid = (kx >= 0) & (kx <= 2)
    B = wt[:, jnp.clip(kx, 0, 2)]                       # (3, w_in, w_out, Cin, Co)
    B = jnp.where(valid[None, :, :, None, None], B, 0.0)
    B = jnp.transpose(B, (0, 1, 3, 2, 4))               # (3, w_in, Cin, w_out, Co)
    return B.reshape(3, w_in * Cin, w_out * Co).astype(dtype)


def _channel_pool(w_out, Co):
    """(w_out*Co, w_out*Co): 1.0 where lane channels match (i%Co == j%Co)."""
    idx = jnp.arange(w_out * Co) % Co
    return (idx[:, None] == idx[None, :]).astype(jnp.float32)


def _tile_channels(v, w_out):
    """(Co,) per-channel vector -> (1, w_out*Co), lane index = ox*Co + co."""
    return jnp.tile(v, (w_out,)).reshape(1, w_out * v.shape[0])


def unet_conv_block(x_nchw, params, *, padding, batch_norm):
    """UNetConvBlock forward. x_nchw: (N, Cin, H, W) -> (N, Co, Ho, Wo)."""
    N, Cin, H, W = x_nchw.shape
    Co = params["w1"].shape[0]
    pad = 1 if padding else 0
    Hp1 = H + 2 * pad
    H1, W1 = Hp1 - 2, W + 2 * pad - 2
    Hp2 = H1 + 2 * pad
    H2, W2 = Hp2 - 2, W1 + 2 * pad - 2
    L2 = W2 * Co

    # NCHW -> NHWC -> lane-dense slab (N, H, W*Cin).
    x2d = jnp.transpose(x_nchw, (0, 2, 3, 1)).reshape(N, H, W * Cin)

    w1b = _banded_weights(params["w1"], W, W1, pad)
    w2b = _banded_weights(params["w2"], W1, W2, pad)
    b1t = _tile_channels(params["b1"], W1)
    b2t = _tile_channels(params["b2"], W2)

    inputs = [x2d, w1b, b1t]
    if batch_norm:
        inputs += [_tile_channels(params["g1"], W1),
                   _tile_channels(params["be1"], W1),
                   _channel_pool(W1, Co)]
    inputs += [w2b, b2t]
    if batch_norm:
        inputs += [_tile_channels(params["g2"], W2),
                   _tile_channels(params["be2"], W2),
                   _channel_pool(W2, Co)]

    kernel = functools.partial(
        fused_unet_block_kernel,
        N=N, H=H, W=W, Cin=Cin, Co=Co, pad=pad, batch_norm=batch_norm)

    in_specs = [pl.BlockSpec(a.shape, lambda i, nd=a.ndim: (0,) * nd)
                for a in inputs]

    out2d = pl.pallas_call(
        kernel,
        out_shape=jax.ShapeDtypeStruct((N * H2, L2), jnp.float32),
        grid=(1,),
        in_specs=in_specs,
        out_specs=pl.BlockSpec((N * H2, L2), lambda i: (0, 0)),
        scratch_shapes=[
            pltpu.VMEM((N, Hp1, W * Cin), jnp.float32),   # H-padded stage-1 input
            pltpu.VMEM((N, Hp2, W1 * Co), jnp.float32),   # H-padded stage-1 output
        ],
        compiler_params=pltpu.CompilerParams(
            dimension_semantics=("arbitrary",),
            vmem_limit_bytes=32 * 1024 * 1024),
    )(*inputs)

    # (N*H2, W2*Co) is row-major identical to NHWC -> cheap reshape + transpose.
    return jnp.transpose(out2d.reshape(N, H2, W2, Co), (0, 3, 1, 2))


# ----------------------------------------------------------------------------
# Pure-JAX reference (mirrors the PyTorch module in training mode).
# ----------------------------------------------------------------------------
def reference(x_nchw, params, *, padding, batch_norm):
    pad = 1 if padding else 0

    def conv(x, w, b):
        y = jax.lax.conv_general_dilated(
            x, w, window_strides=(1, 1), padding=[(pad, pad), (pad, pad)],
            dimension_numbers=("NCHW", "OIHW", "NCHW"))
        return y + b[None, :, None, None]

    def bn(x, g, beta):
        mu = x.mean(axis=(0, 2, 3), keepdims=True)
        var = ((x - mu) ** 2).mean(axis=(0, 2, 3), keepdims=True)
        return ((x - mu) * jax.lax.rsqrt(var + 1e-5)
                * g[None, :, None, None] + beta[None, :, None, None])

    y = jnp.maximum(conv(x_nchw, params["w1"], params["b1"]), 0.0)
    if batch_norm:
        y = bn(y, params["g1"], params["be1"])
    y = jnp.maximum(conv(y, params["w2"], params["b2"]), 0.0)
    if batch_norm:
        y = bn(y, params["g2"], params["be2"])
    return y


if __name__ == "__main__":
    # Module config: UNetConvBlock(in_size=4, out_size=8, padding=True, batch_norm=True)
    in_size, out_size = 4, 8
    padding, batch_norm = True, True
    N, H, W = 2, 16, 16

    key = jax.random.PRNGKey(0)
    k_x, k_w1, k_b1, k_w2, k_b2, k_g1, k_be1, k_g2, k_be2 = jax.random.split(key, 9)

    fan1 = in_size * 9
    fan2 = out_size * 9
    params = {
        "w1": jax.random.normal(k_w1, (out_size, in_size, 3, 3), jnp.float32)
              * (1.0 / math.sqrt(fan1)),
        "b1": jax.random.normal(k_b1, (out_size,), jnp.float32) * 0.1,
        "g1": 1.0 + 0.1 * jax.random.normal(k_g1, (out_size,), jnp.float32),
        "be1": 0.1 * jax.random.normal(k_be1, (out_size,), jnp.float32),
        "w2": jax.random.normal(k_w2, (out_size, out_size, 3, 3), jnp.float32)
              * (1.0 / math.sqrt(fan2)),
        "b2": jax.random.normal(k_b2, (out_size,), jnp.float32) * 0.1,
        "g2": 1.0 + 0.1 * jax.random.normal(k_g2, (out_size,), jnp.float32),
        "be2": 0.1 * jax.random.normal(k_be2, (out_size,), jnp.float32),
    }

    x = jax.random.normal(k_x, (N, in_size, H, W), jnp.float32)  # NCHW, like PyTorch

    out = unet_conv_block(x, params, padding=padding, batch_norm=batch_norm)
    out = jax.block_until_ready(out)

    ref = reference(x, params, padding=padding, batch_norm=batch_norm)
    assert out.shape == (N, out_size, H, W), out.shape
    # bf16 MXU path -> tolerance loosened vs. the f32-only version.
    np.testing.assert_allclose(np.asarray(out), np.asarray(ref),
                               rtol=5e-2, atol=7.5e-2)

    print("KERNEL_OK")
</pallas_src>

<mosaic_0001>
module attributes {stable_mosaic.version = 11 : i64} {
  func.func @fused_unet_block_kernel(%arg0: i32, %arg1: memref<2x16x64xf32, #tpu.memory_space<vmem>>, %arg2: memref<3x64x128xbf16, #tpu.memory_space<vmem>>, %arg3: memref<1x128xf32, #tpu.memory_space<vmem>>, %arg4: memref<1x128xf32, #tpu.memory_space<vmem>>, %arg5: memref<1x128xf32, #tpu.memory_space<vmem>>, %arg6: memref<128x128xf32, #tpu.memory_space<vmem>>, %arg7: memref<3x128x128xbf16, #tpu.memory_space<vmem>>, %arg8: memref<1x128xf32, #tpu.memory_space<vmem>>, %arg9: memref<1x128xf32, #tpu.memory_space<vmem>>, %arg10: memref<1x128xf32, #tpu.memory_space<vmem>>, %arg11: memref<128x128xf32, #tpu.memory_space<vmem>>, %arg12: memref<32x128xf32, #tpu.memory_space<vmem>>, %arg13: memref<2x18x64xf32, #tpu.memory_space<vmem>>, %arg14: memref<2x18x128xf32, #tpu.memory_space<vmem>>) attributes {dimension_semantics = [#tpu.dimension_semantics<arbitrary>], iteration_bounds = array<i64: 1>, scalar_prefetch = 0 : i64, scratch_operands = 2 : i64, tpu.core_type = #tpu.core_type<tc>, window_params = [{pipeline_mode = #tpu.pipeline_mode<synchronous>, transform_indices = @transform_0, window_bounds = array<i64: 2, 16, 64>}, {pipeline_mode = #tpu.pipeline_mode<synchronous>, transform_indices = @transform_1, window_bounds = array<i64: 3, 64, 128>}, {pipeline_mode = #tpu.pipeline_mode<synchronous>, transform_indices = @transform_2, window_bounds = array<i64: 1, 128>}, {pipeline_mode = #tpu.pipeline_mode<synchronous>, transform_indices = @transform_3, window_bounds = array<i64: 1, 128>}, {pipeline_mode = #tpu.pipeline_mode<synchronous>, transform_indices = @transform_4, window_bounds = array<i64: 1, 128>}, {pipeline_mode = #tpu.pipeline_mode<synchronous>, transform_indices = @transform_5, window_bounds = array<i64: 128, 128>}, {pipeline_mode = #tpu.pipeline_mode<synchronous>, transform_indices = @transform_6, window_bounds = array<i64: 3, 128, 128>}, {pipeline_mode = #tpu.pipeline_mode<synchronous>, transform_indices = @transform_7, window_bounds = array<i64: 1, 128>}, {pipeline_mode = #tpu.pipeline_mode<synchronous>, transform_indices = @transform_8, window_bounds = array<i64: 1, 128>}, {pipeline_mode = #tpu.pipeline_mode<synchronous>, transform_indices = @transform_9, window_bounds = array<i64: 1, 128>}, {pipeline_mode = #tpu.pipeline_mode<synchronous>, transform_indices = @transform_10, window_bounds = array<i64: 128, 128>}, {pipeline_mode = #tpu.pipeline_mode<synchronous>, transform_indices = @transform_11, window_bounds = array<i64: 32, 128>}]} {
    %cst = arith.constant 0.000000e+00 : f32
    %0 = vector.broadcast %cst : f32 to vector<2x1x64xf32>
    %c0 = arith.constant 0 : index
    %c0_0 = arith.constant 0 : index
    %c0_1 = arith.constant 0 : index
    %1 = vector.load %arg13[%c0, %c0_0, %c0_1] : memref<2x18x64xf32, #tpu.memory_space<vmem>>, vector<2x1x64xf32>
    tpu.vector_store %arg13[%c0, %c0_0, %c0_1], %0 {strides = array<i32>} : memref<2x18x64xf32, #tpu.memory_space<vmem>>, vector<2x1x64xf32>,
    %c0_2 = arith.constant 0 : index
    %c17 = arith.constant 17 : index
    %c0_3 = arith.constant 0 : index
    %2 = vector.load %arg13[%c0_2, %c17, %c0_3] : memref<2x18x64xf32, #tpu.memory_space<vmem>>, vector<2x1x64xf32>
    tpu.vector_store %arg13[%c0_2, %c17, %c0_3], %0 {strides = array<i32>} : memref<2x18x64xf32, #tpu.memory_space<vmem>>, vector<2x1x64xf32>,
    %c0_4 = arith.constant 0 : index
    %c0_5 = arith.constant 0 : index
    %c0_6 = arith.constant 0 : index
    %3 = vector.load %arg1[%c0_4, %c0_5, %c0_6] : memref<2x16x64xf32, #tpu.memory_space<vmem>>, vector<2x16x64xf32>
    %c0_7 = arith.constant 0 : index
    %c1 = arith.constant 1 : index
    %c0_8 = arith.constant 0 : index
    %4 = vector.load %arg13[%c0_7, %c1, %c0_8] : memref<2x18x64xf32, #tpu.memory_space<vmem>>, vector<2x16x64xf32>
    tpu.vector_store %arg13[%c0_7, %c1, %c0_8], %3 {strides = array<i32>} : memref<2x18x64xf32, #tpu.memory_space<vmem>>, vector<2x16x64xf32>,
    %c0_9 = arith.constant 0 : index
    %c0_10 = arith.constant 0 : index
    %c0_11 = arith.constant 0 : index
    %5 = vector.load %arg13[%c0_9, %c0_10, %c0_11] : memref<2x18x64xf32, #tpu.memory_space<vmem>>, vector<2x18x64xf32>
    %cst_12 = arith.constant 0.000000e+00 : f32
    %6 = vector.broadcast %cst_12 : f32 to vector<32x128xf32>
    %7 = vector.extract_strided_slice %5 {offsets = [0, 0, 0], sizes = [2, 16, 64], strides = [1, 1, 1]} : vector<2x18x64xf32> to vector<2x16x64xf32>
    %8 = vector.shape_cast %7 : vector<2x16x64xf32> to vector<32x64xf32>
    %9 = arith.truncf %8 : vector<32x64xf32> to vector<32x64xbf16>
    %c0_13 = arith.constant 0 : index
    %c0_14 = arith.constant 0 : index
    %c0_15 = arith.constant 0 : index
    %10 = vector.load %arg2[%c0_13, %c0_14, %c0_15] : memref<3x64x128xbf16, #tpu.memory_space<vmem>>, vector<1x64x128xbf16>
    %11 = vector.shape_cast %10 : vector<1x64x128xbf16> to vector<64x128xbf16>
    %cst_16 = arith.constant dense<0.000000e+00> : vector<32x128xf32>
    %12 = tpu.matmul %9, %11, %cst_16 {dimension_numbers = #tpu.dot_dimension_numbers<[1], [0], [0], [1], [0, 0, 1, 1], [], []>} : vector<32x64xbf16>, vector<64x128xbf16>, vector<32x128xf32> -> vector<32x128xf32>
    %13 = arith.addf %6, %12 : vector<32x128xf32>
    %14 = vector.extract_strided_slice %5 {offsets = [0, 1, 0], sizes = [2, 16, 64], strides = [1, 1, 1]} : vector<2x18x64xf32> to vector<2x16x64xf32>
    %15 = vector.shape_cast %14 : vector<2x16x64xf32> to vector<32x64xf32>
    %16 = arith.truncf %15 : vector<32x64xf32> to vector<32x64xbf16>
    %c1_17 = arith.constant 1 : index
    %c0_18 = arith.constant 0 : index
    %c0_19 = arith.constant 0 : index
    %17 = vector.load %arg2[%c1_17, %c0_18, %c0_19] : memref<3x64x128xbf16, #tpu.memory_space<vmem>>, vector<1x64x128xbf16>
    %18 = vector.shape_cast %17 : vector<1x64x128xbf16> to vector<64x128xbf16>
    %cst_20 = arith.constant dense<0.000000e+00> : vector<32x128xf32>
    %19 = tpu.matmul %16, %18, %cst_20 {dimension_numbers = #tpu.dot_dimension_numbers<[1], [0], [0], [1], [0, 0, 1, 1], [], []>} : vector<32x64xbf16>, vector<64x128xbf16>, vector<32x128xf32> -> vector<32x128xf32>
    %20 = arith.addf %13, %19 : vector<32x128xf32>
    %21 = vector.extract_strided_slice %5 {offsets = [0, 2, 0], sizes = [2, 16, 64], strides = [1, 1, 1]} : vector<2x18x64xf32> to vector<2x16x64xf32>
    %22 = vector.shape_cast %21 : vector<2x16x64xf32> to vector<32x64xf32>
    %23 = arith.truncf %22 : vector<32x64xf32> to vector<32x64xbf16>
    %c2 = arith.constant 2 : index
    %c0_21 = arith.constant 0 : index
    %c0_22 = arith.constant 0 : index
    %24 = vector.load %arg2[%c2, %c0_21, %c0_22] : memref<3x64x128xbf16, #tpu.memory_space<vmem>>, vector<1x64x128xbf16>
    %25 = vector.shape_cast %24 : vector<1x64x128xbf16> to vector<64x128xbf16>
    %cst_23 = arith.constant dense<0.000000e+00> : vector<32x128xf32>
    %26 = tpu.matmul %23, %25, %cst_23 {dimension_numbers = #tpu.dot_dimension_numbers<[1], [0], [0], [1], [0, 0, 1, 1], [], []>} : vector<32x64xbf16>, vector<64x128xbf16>, vector<32x128xf32> -> vector<32x128xf32>
    %27 = arith.addf %20, %26 : vector<32x128xf32>
    %c0_24 = arith.constant 0 : index
    %c0_25 = arith.constant 0 : index
    %28 = vector.load %arg3[%c0_24, %c0_25] : memref<1x128xf32, #tpu.memory_space<vmem>>, vector<1x128xf32>
    %29 = vector.broadcast %28 : vector<1x128xf32> to vector<32x128xf32>
    %30 = arith.addf %27, %29 : vector<32x128xf32>
    %cst_26 = arith.constant 0.000000e+00 : f32
    %31 = vector.broadcast %cst_26 : f32 to vector<32x128xf32>
    %32 = arith.maximumf %30, %31 : vector<32x128xf32>
    %c0_27 = arith.constant 0 : index
    %c0_28 = arith.constant 0 : index
    %33 = vector.load %arg6[%c0_27, %c0_28] : memref<128x128xf32, #tpu.memory_space<vmem>>, vector<128x128xf32>
    %c0_29 = arith.constant 0 : index
    %c0_30 = arith.constant 0 : index
    %34 = vector.load %arg4[%c0_29, %c0_30] : memref<1x128xf32, #tpu.memory_space<vmem>>, vector<1x128xf32>
    %c0_31 = arith.constant 0 : index
    %c0_32 = arith.constant 0 : index
    %35 = vector.load %arg5[%c0_31, %c0_32] : memref<1x128xf32, #tpu.memory_space<vmem>>, vector<1x128xf32>
    %cst_33 = arith.constant dense<0.000000e+00> : vector<128xf32>
    %36 = vector.multi_reduction <add>, %32, %cst_33 [0] : vector<32x128xf32> to vector<128xf32>
    %37 = vector.shape_cast %36 : vector<128xf32> to vector<1x128xf32>
    %cst_34 = arith.constant dense<0.000000e+00> : vector<1x128xf32>
    %38 = tpu.matmul %37, %33, %cst_34 {dimension_numbers = #tpu.dot_dimension_numbers<[1], [0], [0], [1], [0, 0, 1, 1], [], []>} : vector<1x128xf32>, vector<128x128xf32>, vector<1x128xf32> -> vector<1x128xf32>
    %cst_35 = arith.constant 5.120000e+02 : f32
    %39 = vector.broadcast %cst_35 : f32 to vector<1x128xf32>
    %40 = arith.divf %38, %39 : vector<1x128xf32>
    %41 = vector.broadcast %40 : vector<1x128xf32> to vector<32x128xf32>
    %42 = arith.subf %32, %41 : vector<32x128xf32>
    %43 = arith.mulf %42, %42 : vector<32x128xf32>
    %cst_36 = arith.constant dense<0.000000e+00> : vector<128xf32>
    %44 = vector.multi_reduction <add>, %43, %cst_36 [0] : vector<32x128xf32> to vector<128xf32>
    %45 = vector.shape_cast %44 : vector<128xf32> to vector<1x128xf32>
    %cst_37 = arith.constant dense<0.000000e+00> : vector<1x128xf32>
    %46 = tpu.matmul %45, %33, %cst_37 {dimension_numbers = #tpu.dot_dimension_numbers<[1], [0], [0], [1], [0, 0, 1, 1], [], []>} : vector<1x128xf32>, vector<128x128xf32>, vector<1x128xf32> -> vector<1x128xf32>
    %cst_38 = arith.constant 5.120000e+02 : f32
    %47 = vector.broadcast %cst_38 : f32 to vector<1x128xf32>
    %48 = arith.divf %46, %47 : vector<1x128xf32>
    %cst_39 = arith.constant 9.99999974E-6 : f32
    %49 = vector.broadcast %cst_39 : f32 to vector<1x128xf32>
    %50 = arith.addf %48, %49 : vector<1x128xf32>
    %51 = math.rsqrt %50 : vector<1x128xf32>
    %52 = arith.mulf %51, %34 : vector<1x128xf32>
    %53 = vector.broadcast %52 : vector<1x128xf32> to vector<32x128xf32>
    %54 = arith.mulf %42, %53 : vector<32x128xf32>
    %55 = vector.broadcast %35 : vector<1x128xf32> to vector<32x128xf32>
    %56 = arith.addf %54, %55 : vector<32x128xf32>
    %cst_40 = arith.constant 0.000000e+00 : f32
    %57 = vector.broadcast %cst_40 : f32 to vector<2x1x128xf32>
    %c0_41 = arith.constant 0 : index
    %c0_42 = arith.constant 0 : index
    %c0_43 = arith.constant 0 : index
    %58 = vector.load %arg14[%c0_41, %c0_42, %c0_43] : memref<2x18x128xf32, #tpu.memory_space<vmem>>, vector<2x1x128xf32>
    tpu.vector_store %arg14[%c0_41, %c0_42, %c0_43], %57 {strides = array<i32>} : memref<2x18x128xf32, #tpu.memory_space<vmem>>, vector<2x1x128xf32>,
    %c0_44 = arith.constant 0 : index
    %c17_45 = arith.constant 17 : index
    %c0_46 = arith.constant 0 : index
    %59 = vector.load %arg14[%c0_44, %c17_45, %c0_46] : memref<2x18x128xf32, #tpu.memory_space<vmem>>, vector<2x1x128xf32>
    tpu.vector_store %arg14[%c0_44, %c17_45, %c0_46], %57 {strides = array<i32>} : memref<2x18x128xf32, #tpu.memory_space<vmem>>, vector<2x1x128xf32>,
    %60 = vector.shape_cast %56 : vector<32x128xf32> to vector<2x16x128xf32>
    %c0_47 = arith.constant 0 : index
    %c1_48 = arith.constant 1 : index
    %c0_49 = arith.constant 0 : index
    %61 = vector.load %arg14[%c0_47, %c1_48, %c0_49] : memref<2x18x128xf32, #tpu.memory_space<vmem>>, vector<2x16x128xf32>
    tpu.vector_store %arg14[%c0_47, %c1_48, %c0_49], %60 {strides = array<i32>} : memref<2x18x128xf32, #tpu.memory_space<vmem>>, vector<2x16x128xf32>,
    %c0_50 = arith.constant 0 : index
    %c0_51 = arith.constant 0 : index
    %c0_52 = arith.constant 0 : index
    %62 = vector.load %arg14[%c0_50, %c0_51, %c0_52] : memref<2x18x128xf32, #tpu.memory_space<vmem>>, vector<2x18x128xf32>
    %cst_53 = arith.constant 0.000000e+00 : f32
    %63 = vector.broadcast %cst_53 : f32 to vector<32x128xf32>
    %64 = vector.extract_strided_slice %62 {offsets = [0, 0, 0], sizes = [2, 16, 128], strides = [1, 1, 1]} : vector<2x18x128xf32> to vector<2x16x128xf32>
    %65 = vector.shape_cast %64 : vector<2x16x128xf32> to vector<32x128xf32>
    %66 = arith.truncf %65 : vector<32x128xf32> to vector<32x128xbf16>
    %c0_54 = arith.constant 0 : index
    %c0_55 = arith.constant 0 : index
    %c0_56 = arith.constant 0 : index
    %67 = vector.load %arg7[%c0_54, %c0_55, %c0_56] : memref<3x128x128xbf16, #tpu.memory_space<vmem>>, vector<1x128x128xbf16>
    %68 = vector.shape_cast %67 : vector<1x128x128xbf16> to vector<128x128xbf16>
    %cst_57 = arith.constant dense<0.000000e+00> : vector<32x128xf32>
    %69 = tpu.matmul %66, %68, %cst_57 {dimension_numbers = #tpu.dot_dimension_numbers<[1], [0], [0], [1], [0, 0, 1, 1], [], []>} : vector<32x128xbf16>, vector<128x128xbf16>, vector<32x128xf32> -> vector<32x128xf32>
    %70 = arith.addf %63, %69 : vector<32x128xf32>
    %71 = vector.extract_strided_slice %62 {offsets = [0, 1, 0], sizes = [2, 16, 128], strides = [1, 1, 1]} : vector<2x18x128xf32> to vector<2x16x128xf32>
    %72 = vector.shape_cast %71 : vector<2x16x128xf32> to vector<32x128xf32>
    %73 = arith.truncf %72 : vector<32x128xf32> to vector<32x128xbf16>
    %c1_58 = arith.constant 1 : index
    %c0_59 = arith.constant 0 : index
    %c0_60 = arith.constant 0 : index
    %74 = vector.load %arg7[%c1_58, %c0_59, %c0_60] : memref<3x128x128xbf16, #tpu.memory_space<vmem>>, vector<1x128x128xbf16>
    %75 = vector.shape_cast %74 : vector<1x128x128xbf16> to vector<128x128xbf16>
    %cst_61 = arith.constant dense<0.000000e+00> : vector<32x128xf32>
    %76 = tpu.matmul %73, %75, %cst_61 {dimension_numbers = #tpu.dot_dimension_numbers<[1], [0], [0], [1], [0, 0, 1, 1], [], []>} : vector<32x128xbf16>, vector<128x128xbf16>, vector<32x128xf32> -> vector<32x128xf32>
    %77 = arith.addf %70, %76 : vector<32x128xf32>
    %78 = vector.extract_strided_slice %62 {offsets = [0, 2, 0], sizes = [2, 16, 128], strides = [1, 1, 1]} : vector<2x18x128xf32> to vector<2x16x128xf32>
    %79 = vector.shape_cast %78 : vector<2x16x128xf32> to vector<32x128xf32>
    %80 = arith.truncf %79 : vector<32x128xf32> to vector<32x128xbf16>
    %c2_62 = arith.constant 2 : index
    %c0_63 = arith.constant 0 : index
    %c0_64 = arith.constant 0 : index
    %81 = vector.load %arg7[%c2_62, %c0_63, %c0_64] : memref<3x128x128xbf16, #tpu.memory_space<vmem>>, vector<1x128x128xbf16>
    %82 = vector.shape_cast %81 : vector<1x128x128xbf16> to vector<128x128xbf16>
    %cst_65 = arith.constant dense<0.000000e+00> : vector<32x128xf32>
    %83 = tpu.matmul %80, %82, %cst_65 {dimension_numbers = #tpu.dot_dimension_numbers<[1], [0], [0], [1], [0, 0, 1, 1], [], []>} : vector<32x128xbf16>, vector<128x128xbf16>, vector<32x128xf32> -> vector<32x128xf32>
    %84 = arith.addf %77, %83 : vector<32x128xf32>
    %c0_66 = arith.constant 0 : index
    %c0_67 = arith.constant 0 : index
    %85 = vector.load %arg8[%c0_66, %c0_67] : memref<1x128xf32, #tpu.memory_space<vmem>>, vector<1x128xf32>
    %86 = vector.broadcast %85 : vector<1x128xf32> to vector<32x128xf32>
    %87 = arith.addf %84, %86 : vector<32x128xf32>
    %cst_68 = arith.constant 0.000000e+00 : f32
    %88 = vector.broadcast %cst_68 : f32 to vector<32x128xf32>
    %89 = arith.maximumf %87, %88 : vector<32x128xf32>
    %c0_69 = arith.constant 0 : index
    %c0_70 = arith.constant 0 : index
    %90 = vector.load %arg11[%c0_69, %c0_70] : memref<128x128xf32, #tpu.memory_space<vmem>>, vector<128x128xf32>
    %c0_71 = arith.constant 0 : index
    %c0_72 = arith.constant 0 : index
    %91 = vector.load %arg9[%c0_71, %c0_72] : memref<1x128xf32, #tpu.memory_space<vmem>>, vector<1x128xf32>
    %c0_73 = arith.constant 0 : index
    %c0_74 = arith.constant 0 : index
    %92 = vector.load %arg10[%c0_73, %c0_74] : memref<1x128xf32, #tpu.memory_space<vmem>>, vector<1x128xf32>
    %cst_75 = arith.constant dense<0.000000e+00> : vector<128xf32>
    %93 = vector.multi_reduction <add>, %89, %cst_75 [0] : vector<32x128xf32> to vector<128xf32>
    %94 = vector.shape_cast %93 : vector<128xf32> to vector<1x128xf32>
    %cst_76 = arith.constant dense<0.000000e+00> : vector<1x128xf32>
    %95 = tpu.matmul %94, %90, %cst_76 {dimension_numbers = #tpu.dot_dimension_numbers<[1], [0], [0], [1], [0, 0, 1, 1], [], []>} : vector<1x128xf32>, vector<128x128xf32>, vector<1x128xf32> -> vector<1x128xf32>
    %cst_77 = arith.constant 5.120000e+02 : f32
    %96 = vector.broadcast %cst_77 : f32 to vector<1x128xf32>
    %97 = arith.divf %95, %96 : vector<1x128xf32>
    %98 = vector.broadcast %97 : vector<1x128xf32> to vector<32x128xf32>
    %99 = arith.subf %89, %98 : vector<32x128xf32>
    %100 = arith.mulf %99, %99 : vector<32x128xf32>
    %cst_78 = arith.constant dense<0.000000e+00> : vector<128xf32>
    %101 = vector.multi_reduction <add>, %100, %cst_78 [0] : vector<32x128xf32> to vector<128xf32>
    %102 = vector.shape_cast %101 : vector<128xf32> to vector<1x128xf32>
    %cst_79 = arith.constant dense<0.000000e+00> : vector<1x128xf32>
    %103 = tpu.matmul %102, %90, %cst_79 {dimension_numbers = #tpu.dot_dimension_numbers<[1], [0], [0], [1], [0, 0, 1, 1], [], []>} : vector<1x128xf32>, vector<128x128xf32>, vector<1x128xf32> -> vector<1x128xf32>
    %cst_80 = arith.constant 5.120000e+02 : f32
    %104 = vector.broadcast %cst_80 : f32 to vector<1x128xf32>
    %105 = arith.divf %103, %104 : vector<1x128xf32>
    %cst_81 = arith.constant 9.99999974E-6 : f32
    %106 = vector.broadcast %cst_81 : f32 to vector<1x128xf32>
    %107 = arith.addf %105, %106 : vector<1x128xf32>
    %108 = math.rsqrt %107 : vector<1x128xf32>
    %109 = arith.mulf %108, %91 : vector<1x128xf32>
    %110 = vector.broadcast %109 : vector<1x128xf32> to vector<32x128xf32>
    %111 = arith.mulf %99, %110 : vector<32x128xf32>
    %112 = vector.broadcast %92 : vector<1x128xf32> to vector<32x128xf32>
    %113 = arith.addf %111, %112 : vector<32x128xf32>
    %c0_82 = arith.constant 0 : index
    %c0_83 = arith.constant 0 : index
    %114 = vector.load %arg12[%c0_82, %c0_83] : memref<32x128xf32, #tpu.memory_space<vmem>>, vector<32x128xf32>
    tpu.vector_store %arg12[%c0_82, %c0_83], %113 {strides = array<i32>} : memref<32x128xf32, #tpu.memory_space<vmem>>, vector<32x128xf32>,
    return
  }
  func.func @transform_0(%arg0: i32) -> (i32, i32, i32) {
    %c0_i32 = arith.constant 0 : i32
    %c0_i32_0 = arith.constant 0 : i32
    %c0_i32_1 = arith.constant 0 : i32
    %c0_i32_2 = arith.constant 0 : i32
    return %c0_i32, %c0_i32_0, %c0_i32_1 : i32, i32, i32
  }
  func.func @transform_1(%arg0: i32) -> (i32, i32, i32) {
    %c0_i32 = arith.constant 0 : i32
    %c0_i32_0 = arith.constant 0 : i32
    %c0_i32_1 = arith.constant 0 : i32
    %c0_i32_2 = arith.constant 0 : i32
    return %c0_i32, %c0_i32_0, %c0_i32_1 : i32, i32, i32
  }
  func.func @transform_2(%arg0: i32) -> (i32, i32) {
    %c0_i32 = arith.constant 0 : i32
    %c0_i32_0 = arith.constant 0 : i32
    %c0_i32_1 = arith.constant 0 : i32
    return %c0_i32, %c0_i32_0 : i32, i32
  }
  func.func @transform_3(%arg0: i32) -> (i32, i32) {
    %c0_i32 = arith.constant 0 : i32
    %c0_i32_0 = arith.constant 0 : i32
    %c0_i32_1 = arith.constant 0 : i32
    return %c0_i32, %c0_i32_0 : i32, i32
  }
  func.func @transform_4(%arg0: i32) -> (i32, i32) {
    %c0_i32 = arith.constant 0 : i32
    %c0_i32_0 = arith.constant 0 : i32
    %c0_i32_1 = arith.constant 0 : i32
    return %c0_i32, %c0_i32_0 : i32, i32
  }
  func.func @transform_5(%arg0: i32) -> (i32, i32) {
    %c0_i32 = arith.constant 0 : i32
    %c0_i32_0 = arith.constant 0 : i32
    %c0_i32_1 = arith.constant 0 : i32
    return %c0_i32, %c0_i32_0 : i32, i32
  }
  func.func @transform_6(%arg0: i32) -> (i32, i32, i32) {
    %c0_i32 = arith.constant 0 : i32
    %c0_i32_0 = arith.constant 0 : i32
    %c0_i32_1 = arith.constant 0 : i32
    %c0_i32_2 = arith.constant 0 : i32
    return %c0_i32, %c0_i32_0, %c0_i32_1 : i32, i32, i32
  }
  func.func @transform_7(%arg0: i32) -> (i32, i32) {
    %c0_i32 = arith.constant 0 : i32
    %c0_i32_0 = arith.constant 0 : i32
    %c0_i32_1 = arith.constant 0 : i32
    return %c0_i32, %c0_i32_0 : i32, i32
  }
  func.func @transform_8(%arg0: i32) -> (i32, i32) {
    %c0_i32 = arith.constant 0 : i32
    %c0_i32_0 = arith.constant 0 : i32
    %c0_i32_1 = arith.constant 0 : i32
    return %c0_i32, %c0_i32_0 : i32, i32
  }
  func.func @transform_9(%arg0: i32) -> (i32, i32) {
    %c0_i32 = arith.constant 0 : i32
    %c0_i32_0 = arith.constant 0 : i32
    %c0_i32_1 = arith.constant 0 : i32
    return %c0_i32, %c0_i32_0 : i32, i32
  }
  func.func @transform_10(%arg0: i32) -> (i32, i32) {
    %c0_i32 = arith.constant 0 : i32
    %c0_i32_0 = arith.constant 0 : i32
    %c0_i32_1 = arith.constant 0 : i32
    return %c0_i32, %c0_i32_0 : i32, i32
  }
  func.func @transform_11(%arg0: i32) -> (i32, i32) {
    %c0_i32 = arith.constant 0 : i32
    %c0_i32_0 = arith.constant 0 : i32
    %c0_i32_1 = arith.constant 0 : i32
    return %c0_i32, %c0_i32_0 : i32, i32
  }
}

</mosaic_0001>

<llo_original>
// kernel: tpu_custom_call.1
$region0: #{tpu_custom_call.1}
  #allocation0 [shape = 'u32[]', space=smem, size = 0x4, offset = 0x4, fixed_abs, tag = 'smem constant byte address 0x4 - core index']
  #allocation1 [shape = 'u32[144,128]{1,0:T(1,128)}', space=vmem, size = 0x12000, scoped, tag = 'internal scratch']
  #allocation2 [shape = 'f32[2,18,64]{2,1,0:T(8,128)}', space=vmem, size = 0x6000, scoped, tag = 'scratch operand']
  #allocation3 [shape = 'f32[2,18,128]{2,1,0:T(8,128)}', space=vmem, size = 0x6000, scoped, tag = 'scratch operand']
  %s0 = inlined_call_operand.hbm [shape: f32[2,16,64], index: 0, kind: input, shape index: {}]
  %s1 = inlined_call_operand.hbm [shape: bf16[3,64,128], index: 1, kind: input, shape index: {}]
  %s2 = inlined_call_operand.vmem [shape: f32[1,128], index: 2, kind: input, shape index: {}]
  %s3 = inlined_call_operand.vmem [shape: f32[1,128], index: 3, kind: input, shape index: {}]
  %s4 = inlined_call_operand.vmem [shape: f32[1,128], index: 4, kind: input, shape index: {}]
  %s5 = inlined_call_operand.hbm [shape: f32[128,128], index: 5, kind: input, shape index: {}]
  %s6 = inlined_call_operand.hbm [shape: bf16[3,128,128], index: 6, kind: input, shape index: {}]
  %s7 = inlined_call_operand.vmem [shape: f32[1,128], index: 7, kind: input, shape index: {}]
  %s8 = inlined_call_operand.vmem [shape: f32[1,128], index: 8, kind: input, shape index: {}]
  %s9 = inlined_call_operand.vmem [shape: f32[1,128], index: 9, kind: input, shape index: {}]
  %s10 = inlined_call_operand.hbm [shape: f32[128,128], index: 10, kind: input, shape index: {}]
  %s11 = inlined_call_operand.hbm [shape: f32[32,128], index: 11, kind: output, shape index: {}]
  %s12 = sld [smem:[#allocation0]]
  $region74: #{tpu_custom_call.1} parent=0
    _
  %s14 = ssub.s32 1, %s12
  %s15 = scalar_select 0, %s14, %s12
  $region1: #{tpu_custom_call.1} parent=0
    #allocation4 [shape = 'u8[16384]{0}', space=vmem, size = 0x4000, scoped, tag = 'input window, operand 0, single buffered']
    #allocation5 [shape = 's32[1]{0}', space=sflag, size = 0x4, scoped, tag = 'scoped memory for tpu_custom_call.1']
    #allocation6 [shape = 's32[1]{0}', space=sflag, size = 0x4, scoped, tag = 'scoped memory for tpu_custom_call.1']
    #allocation7 [shape = 'u8[49152]{0}', space=vmem, size = 0xc000, scoped, tag = 'input window, operand 1, single buffered']
    #allocation8 [shape = 's32[1]{0}', space=sflag, size = 0x4, scoped, tag = 'scoped memory for tpu_custom_call.1']
    #allocation9 [shape = 'u8[65536]{0}', space=vmem, size = 0x10000, scoped, tag = 'input window, operand 5, single buffered']
    #allocation10 [shape = 'u8[98304]{0}', space=vmem, size = 0x18000, scoped, tag = 'input window, operand 6, single buffered']
    #allocation11 [shape = 's32[1]{0}', space=sflag, size = 0x4, scoped, tag = 'scoped memory for tpu_custom_call.1']
    #allocation12 [shape = 'u8[65536]{0}', space=vmem, size = 0x10000, scoped, tag = 'input window, operand 10, single buffered']
    #allocation13 [shape = 'u8[16384]{0}', space=vmem, size = 0x4000, scoped, tag = 'output window, operand 0, single buffered']
    %16 = vsyncpa [#allocation5], 0
    %17 = vsyncpa [#allocation8], 0
    %18 = vsyncpa [#allocation11], 0
    %19 = vsyncpa [#allocation6], 0
    // Predicated region
    $region2: #{tpu_custom_call.1} parent=1 // pred_check
      _
    $region3: #{tpu_custom_call.1} parent=1 // pred_check_branch
      %21 = sbr.rel (0) target = $region5
    $region4: #{tpu_custom_call.1} parent=1 // pred_region
      %s23 = ssub.s32 512, 512
      %24 = vsyncadd [#allocation5], %s23
      %s25 = sshll.u32 [#allocation4], 4
      %s26 = int_to_ptr.vmem [resolvable:$true] %s25
      %31 = dma.hbm_to_vmem [thread:$0]  %s0, 512, %s26, [#allocation5], 128, 128, 8
    $region5: #{tpu_custom_call.1} parent=1 // pred_fallthru
      _
    // Predicated region
    $region6: #{tpu_custom_call.1} parent=1 // pred_check
      _
    $region7: #{tpu_custom_call.1} parent=1 // pred_check_branch
      %33 = sbr.rel (0) target = $region9
    $region8: #{tpu_custom_call.1} parent=1 // pred_region
      %s35 = ssub.s32 1536, 1536
      %36 = vsyncadd [#allocation8], %s35
      %s37 = sshll.u32 [#allocation7], 4
      %s38 = int_to_ptr.vmem [resolvable:$true] %s37
      %43 = dma.hbm_to_vmem [thread:$0]  %s1, 1536, %s38, [#allocation8], 64, 64, 4
    $region9: #{tpu_custom_call.1} parent=1 // pred_fallthru
      _
    // Predicated region
    $region10: #{tpu_custom_call.1} parent=1 // pred_check
      _
    $region11: #{tpu_custom_call.1} parent=1 // pred_check_branch
      %45 = sbr.rel (0) target = $region13
    $region12: #{tpu_custom_call.1} parent=1 // pred_region
      _
    $region13: #{tpu_custom_call.1} parent=1 // pred_fallthru
      _
    // Predicated region
    $region14: #{tpu_custom_call.1} parent=1 // pred_check
      _
    $region15: #{tpu_custom_call.1} parent=1 // pred_check_branch
      %47 = sbr.rel (0) target = $region17
    $region16: #{tpu_custom_call.1} parent=1 // pred_region
      _
    $region17: #{tpu_custom_call.1} parent=1 // pred_fallthru
      _
    // Predicated region
    $region18: #{tpu_custom_call.1} parent=1 // pred_check
      _
    $region19: #{tpu_custom_call.1} parent=1 // pred_check_branch
      %49 = sbr.rel (0) target = $region21
    $region20: #{tpu_custom_call.1} parent=1 // pred_region
      _
    $region21: #{tpu_custom_call.1} parent=1 // pred_fallthru
      _
    // Predicated region
    $region22: #{tpu_custom_call.1} parent=1 // pred_check
      _
    $region23: #{tpu_custom_call.1} parent=1 // pred_check_branch
      %51 = sbr.rel (0) target = $region25
    $region24: #{tpu_custom_call.1} parent=1 // pred_region
      %s53 = ssub.s32 2048, 2048
      %54 = vsyncadd [#allocation8], %s53
      %s55 = sshll.u32 [#allocation9], 4
      %s56 = int_to_ptr.vmem [resolvable:$true] %s55
      %61 = dma.hbm_to_vmem [thread:$0]  %s5, 2048, %s56, [#allocation8], 128, 128, 8
    $region25: #{tpu_custom_call.1} parent=1 // pred_fallthru
      _
    // Predicated region
    $region26: #{tpu_custom_call.1} parent=1 // pred_check
      _
    $region27: #{tpu_custom_call.1} parent=1 // pred_check_branch
      %63 = sbr.rel (0) target = $region29
    $region28: #{tpu_custom_call.1} parent=1 // pred_region
      %s65 = ssub.s32 3072, 3072
      %66 = vsyncadd [#allocation11], %s65
      %s67 = sshll.u32 [#allocation10], 4
      %s68 = int_to_ptr.vmem [resolvable:$true] %s67
      %73 = dma.hbm_to_vmem [thread:$0]  %s6, 3072, %s68, [#allocation11], 64, 64, 4
    $region29: #{tpu_custom_call.1} parent=1 // pred_fallthru
      _
    // Predicated region
    $region30: #{tpu_custom_call.1} parent=1 // pred_check
      _
    $region31: #{tpu_custom_call.1} parent=1 // pred_check_branch
      %75 = sbr.rel (0) target = $region33
    $region32: #{tpu_custom_call.1} parent=1 // pred_region
      _
    $region33: #{tpu_custom_call.1} parent=1 // pred_fallthru
      _
    // Predicated region
    $region34: #{tpu_custom_call.1} parent=1 // pred_check
      _
    $region35: #{tpu_custom_call.1} parent=1 // pred_check_branch
      %77 = sbr.rel (0) target = $region37
    $region36: #{tpu_custom_call.1} parent=1 // pred_region
      _
    $region37: #{tpu_custom_call.1} parent=1 // pred_fallthru
      _
    // Predicated region
    $region38: #{tpu_custom_call.1} parent=1 // pred_check
      _
    $region39: #{tpu_custom_call.1} parent=1 // pred_check_branch
      %79 = sbr.rel (0) target = $region41
    $region40: #{tpu_custom_call.1} parent=1 // pred_region
      _
    $region41: #{tpu_custom_call.1} parent=1 // pred_fallthru
      _
    // Predicated region
    $region42: #{tpu_custom_call.1} parent=1 // pred_check
      _
    $region43: #{tpu_custom_call.1} parent=1 // pred_check_branch
      %81 = sbr.rel (0) target = $region45
    $region44: #{tpu_custom_call.1} parent=1 // pred_region
      %s83 = ssub.s32 2048, 2048
      %84 = vsyncadd [#allocation11], %s83
      %s85 = sshll.u32 [#allocation12], 4
      %s86 = int_to_ptr.vmem [resolvable:$true] %s85
      %91 = dma.hbm_to_vmem [thread:$0]  %s10, 2048, %s86, [#allocation11], 128, 128, 8
    $region45: #{tpu_custom_call.1} parent=1 // pred_fallthru
      _
    // Predicated region
    $region46: #{tpu_custom_call.1} parent=1 // pred_check
      _
    $region47: #{tpu_custom_call.1} parent=1 // pred_check_branch
      %93 = sbr.rel (0) target = $region49
    $region48: #{tpu_custom_call.1} parent=1 // pred_region
      %94 = dma.done [#allocation5], 512
    $region49: #{tpu_custom_call.1} parent=1 // pred_fallthru
      _
    // Predicated region
    $region50: #{tpu_custom_call.1} parent=1 // pred_check
      _
    $region51: #{tpu_custom_call.1} parent=1 // pred_check_branch
      %96 = sbr.rel (0) target = $region53
    $region52: #{tpu_custom_call.1} parent=1 // pred_region
      %97 = dma.done [#allocation8], 1536
    $region53: #{tpu_custom_call.1} parent=1 // pred_fallthru
      _
    // Predicated region
    $region54: #{tpu_custom_call.1} parent=1 // pred_check
      _
    $region55: #{tpu_custom_call.1} parent=1 // pred_check_branch
      %99 = sbr.rel (0) target = $region57
    $region56: #{tpu_custom_call.1} parent=1 // pred_region
      %100 = dma.done [#allocation8], 2048
    $region57: #{tpu_custom_call.1} parent=1 // pred_fallthru
      _
    // Predicated region
    $region58: #{tpu_custom_call.1} parent=1 // pred_check
      _
    $region59: #{tpu_custom_call.1} parent=1 // pred_check_branch
      %102 = sbr.rel (0) target = $region61
    $region60: #{tpu_custom_call.1} parent=1 // pred_region
      %103 = dma.done [#allocation11], 3072
    $region61: #{tpu_custom_call.1} parent=1 // pred_fallthru
      _
    // Predicated region
    $region62: #{tpu_custom_call.1} parent=1 // pred_check
      _
    $region63: #{tpu_custom_call.1} parent=1 // pred_check_branch
      %105 = sbr.rel (0) target = $region65
    $region64: #{tpu_custom_call.1} parent=1 // pred_region
      %106 = dma.done [#allocation11], 2048
    $region65: #{tpu_custom_call.1} parent=1 // pred_fallthru
      _
    %vm108 = vcmask 516096
    %109 = vst.msk [vmem:[#allocation2] sm:$0x1] %vm108, 0.0
    %110 = vst.msk [vmem:[#allocation2 + $0x18] sm:$0x1] %vm108, 0.0
    %111 = vst.msk [vmem:[#allocation2 + $0x11] sm:$0x1] %vm108, 0.0
    %112 = vst.msk [vmem:[#allocation2 + $0x29] sm:$0x1] %vm108, 0.0
    %v113 = vld [vmem:[#allocation4] sm:$0xff]
    %v114 = vld [vmem:[#allocation4 + $0x8] sm:$0xff]
    %v115 = vld [vmem:[#allocation4 + $0x10] sm:$0xff]
    %v116 = vld [vmem:[#allocation4 + $0x18] sm:$0xff]
    %vm117 = vcmask 523264
    %118 = vst.msk [vmem:[#allocation2 + $0x1] sm:$0xff] %vm117, %v113
    %119 = vst.msk [vmem:[#allocation2 + $0x9] sm:$0xff] %vm117, %v114
    %120 = vst.msk [vmem:[#allocation2 + $0x19] sm:$0xff] %vm117, %v115
    %121 = vst.msk [vmem:[#allocation2 + $0x21] sm:$0xff] %vm117, %v116
    %v122 = vld [vmem:[#allocation2] sm:$0xff]
    %v123 = vld [vmem:[#allocation2 + $0x8] sm:$0xff]
    %v124 = vld [vmem:[#allocation2 + $0x10] sm:$0x3]
    %v125 = vld [vmem:[#allocation2 + $0x18] sm:$0xff]
    %v126 = vld [vmem:[#allocation2 + $0x20] sm:$0xff]
    %v127 = vld [vmem:[#allocation2 + $0x28] sm:$0x3]
    %v128 = vpack.c.bf16 %v123, %v122
    %v129 = vpack.c.bf16 %v126, %v125
    %v130 = vld [vmem:[#allocation7] sm:$0xf]
    %v131 = vld [vmem:[#allocation7 + $0x4] sm:$0xf]
    %v132 = vld [vmem:[#allocation7 + $0x8] sm:$0xf]
    %v133 = vld [vmem:[#allocation7 + $0xc] sm:$0xf]
    %v134 = vld [vmem:[#allocation7 + $0x10] sm:$0xf]
    %v135 = vld [vmem:[#allocation7 + $0x14] sm:$0xf]
    %v136 = vld [vmem:[#allocation7 + $0x18] sm:$0xf]
    %v137 = vld [vmem:[#allocation7 + $0x1c] sm:$0xf]
    %vm144 = vcmask 1046528
    %v145 = vrot.slane %v122, 1
    %v146 = vrot.slane %v123, 1
    %v147 = vsel %vm144, %v145, %v146
    %v148 = vrot.slane %v124, 1
    %v149 = vsel %vm144, %v146, %v148
    %v150 = vrot.slane %v125, 1
    %v151 = vrot.slane %v126, 1
    %v152 = vsel %vm144, %v150, %v151
    %v153 = vrot.slane %v127, 1
    %v154 = vsel %vm144, %v151, %v153
    %v159 = vpack.c.bf16 %v149, %v147
    %v160 = vpack.c.bf16 %v154, %v152
    %s161 = scalar_lea.vmem [#allocation7], 32
    %v162 = vld [vmem:[%s161] sm:$0xf]
    %v163 = vld [vmem:[%s161 + $0x4] sm:$0xf]
    %v164 = vld [vmem:[%s161 + $0x8] sm:$0xf]
    %v165 = vld [vmem:[%s161 + $0xc] sm:$0xf]
    %v166 = vld [vmem:[%s161 + $0x10] sm:$0xf]
    %v167 = vld [vmem:[%s161 + $0x14] sm:$0xf]
    %v168 = vld [vmem:[%s161 + $0x18] sm:$0xf]
    %v169 = vld [vmem:[%s161 + $0x1c] sm:$0xf]
    %v178 = vunpack.c.l.b16 %v162
    %v179 = vunpack.c.l.b16 %v163
    %v180 = vunpack.c.l.b16 %v164
    %v181 = vunpack.c.l.b16 %v165
    %v182 = vunpack.c.l.b16 %v166
    %v183 = vunpack.c.l.b16 %v167
    %v184 = vunpack.c.l.b16 %v168
    %v185 = vunpack.c.l.b16 %v169
    %v186 = vpack.c.b16 %v179, %v178
    %v187 = vpack.c.b16 %v181, %v180
    %v188 = vpack.c.b16 %v183, %v182
    %v189 = vpack.c.b16 %v185, %v184
    %v195 = vsel %vm117, %v159, 0
    %v198 = vsel %vm117, %v160, 0
    %200 = vmatprep.subr.bf16.mxu0 0
    %201 = vmatpush1.bf16.msra.mxu0 0
    %202 = vmatprep.subr.bf16.mxu0 0
    %203 = vmatpush1.bf16.msra.mxu0 0
    %204 = vmatprep.subr.bf16.mxu0 0
    %205 = vmatpush1.bf16.msra.mxu0 0
    %206 = vmatprep.subr.bf16.mxu0 0
    %207 = vmatpush1.bf16.msra.mxu0 0
    %208 = vmatprep.subr.bf16.mxu0 0
    %209 = vmatpush1.bf16.msra.mxu0 %v189
    %210 = vmatprep.subr.bf16.mxu0 0
    %211 = vmatpush1.bf16.msra.mxu0 %v188
    %212 = vmatprep.subr.bf16.mxu0 0
    %213 = vmatpush1.bf16.msra.mxu0 %v187
    %214 = vmatprep.subr.bf16.mxu0 0
    %215 = vmatpush1.bf16.msra.mxu0 %v186
    %216 = vmatprep.subr.bf16.mxu0 0
    %217 = vmatpush2.bf16.msra.mxu0 0
    %218 = vmatprep.subr.bf16.mxu0 0
    %219 = vmatpush2.bf16.msra.mxu0 0
    %220 = vmatprep.subr.bf16.mxu0 0
    %221 = vmatpush2.bf16.msra.mxu0 0
    %222 = vmatprep.subr.bf16.mxu0 0
    %223 = vmatpush2.bf16.msra.mxu0 0
    %224 = vmatprep.subr.bf16.mxu0 0
    %225 = vmatpush2.bf16.msra.mxu0 0
    %226 = vmatprep.subr.bf16.mxu0 0
    %227 = vmatpush2.bf16.msra.mxu0 0
    %228 = vmatprep.subr.bf16.mxu0 0
    %229 = vmatpush2.bf16.msra.mxu0 0
    %230 = vmatprep.subr.bf16.mxu0 0
    %231 = vmatpush2.bf16.msra.mxu0 0
    %232 = vmatprep.mubr.bf16.mxu0 0
    %233 = vmatmul.mubr.bf16.gmra.mxu0 %v195
    %v234 = vpop.f32.mrf.mxu0
    %v235 = vadd.f32 0.0, %v234
    %v236 = vpop.f32.mrf.mxu0
    %v237 = vpop.f32.mrf.mxu0
    %v238 = vadd.f32 0.0, %v237
    %v239 = vpop.f32.mrf.mxu0
    %240 = vmatprep.mubr.bf16.mxu0 0
    %241 = vmatmul.mubr.bf16.gmra.mxu0 %v198
    %v242 = vpop.f32.mrf.mxu0
    %v243 = vadd.f32 0.0, %v242
    %v244 = vpop.f32.mrf.mxu0
    %v245 = vpop.f32.mrf.mxu0
    %v246 = vadd.f32 0.0, %v245
    %v247 = vpop.f32.mrf.mxu0
    %248 = vdwg.mxu0
    %v257 = vunpack.c.l.b16 %v130
    %v258 = vunpack.c.l.b16 %v131
    %v259 = vunpack.c.l.b16 %v132
    %v260 = vunpack.c.l.b16 %v133
    %v261 = vunpack.c.l.b16 %v134
    %v262 = vunpack.c.l.b16 %v135
    %v263 = vunpack.c.l.b16 %v136
    %v264 = vunpack.c.l.b16 %v137
    %v265 = vpack.c.b16 %v258, %v257
    %v266 = vpack.c.b16 %v260, %v259
    %v267 = vpack.c.b16 %v262, %v261
    %v268 = vpack.c.b16 %v264, %v263
    %v274 = vsel %vm117, %v128, 0
    %v277 = vsel %vm117, %v129, 0
    %279 = vmatprep.subr.bf16.mxu0 0
    %280 = vmatpush1.bf16.msra.mxu0 0
    %281 = vmatprep.subr.bf16.mxu0 0
    %282 = vmatpush1.bf16.msra.mxu0 0
    %283 = vmatprep.subr.bf16.mxu0 0
    %284 = vmatpush1.bf16.msra.mxu0 0
    %285 = vmatprep.subr.bf16.mxu0 0
    %286 = vmatpush1.bf16.msra.mxu0 0
    %287 = vmatprep.subr.bf16.mxu0 0
    %288 = vmatpush1.bf16.msra.mxu0 %v268
    %289 = vmatprep.subr.bf16.mxu0 0
    %290 = vmatpush1.bf16.msra.mxu0 %v267
    %291 = vmatprep.subr.bf16.mxu0 0
    %292 = vmatpush1.bf16.msra.mxu0 %v266
    %293 = vmatprep.subr.bf16.mxu0 0
    %294 = vmatpush1.bf16.msra.mxu0 %v265
    %295 = vmatprep.subr.bf16.mxu0 0
    %296 = vmatpush2.bf16.msra.mxu0 0
    %297 = vmatprep.subr.bf16.mxu0 0
    %298 = vmatpush2.bf16.msra.mxu0 0
    %299 = vmatprep.subr.bf16.mxu0 0
    %300 = vmatpush2.bf16.msra.mxu0 0
    %301 = vmatprep.subr.bf16.mxu0 0
    %302 = vmatpush2.bf16.msra.mxu0 0
    %303 = vmatprep.subr.bf16.mxu0 0
    %304 = vmatpush2.bf16.msra.mxu0 0
    %305 = vmatprep.subr.bf16.mxu0 0
    %306 = vmatpush2.bf16.msra.mxu0 0
    %307 = vmatprep.subr.bf16.mxu0 0
    %308 = vmatpush2.bf16.msra.mxu0 0
    %309 = vmatprep.subr.bf16.mxu0 0
    %310 = vmatpush2.bf16.msra.mxu0 0
    %311 = vmatprep.mubr.bf16.mxu0 0
    %312 = vmatmul.mubr.bf16.gmra.mxu0 %v274
    %v313 = vpop.f32.mrf.mxu0
    %v314 = vadd.f32 %v235, %v313
    %v315 = vpop.f32.mrf.mxu0
    %v316 = vpop.f32.mrf.mxu0
    %v317 = vadd.f32 %v238, %v316
    %v318 = vpop.f32.mrf.mxu0
    %319 = vmatprep.mubr.bf16.mxu0 0
    %320 = vmatmul.mubr.bf16.gmra.mxu0 %v277
    %v321 = vpop.f32.mrf.mxu0
    %v322 = vadd.f32 %v243, %v321
    %v323 = vpop.f32.mrf.mxu0
    %v324 = vpop.f32.mrf.mxu0
    %v325 = vadd.f32 %v246, %v324
    %v326 = vpop.f32.mrf.mxu0
    %327 = vdwg.mxu0
    %vm328 = vcmask 1045504
    %v329 = vrot.slane %v122, 2
    %v330 = vrot.slane %v123, 2
    %v331 = vsel %vm328, %v329, %v330
    %v332 = vrot.slane %v124, 2
    %v333 = vsel %vm328, %v330, %v332
    %v334 = vrot.slane %v125, 2
    %v335 = vrot.slane %v126, 2
    %v336 = vsel %vm328, %v334, %v335
    %v337 = vrot.slane %v127, 2
    %v338 = vsel %vm328, %v335, %v337
    %v343 = vpack.c.bf16 %v333, %v331
    %v344 = vpack.c.bf16 %v338, %v336
    %s345 = scalar_lea.vmem [#allocation7], 64
    %v346 = vld [vmem:[%s345] sm:$0xf]
    %v347 = vld [vmem:[%s345 + $0x4] sm:$0xf]
    %v348 = vld [vmem:[%s345 + $0x8] sm:$0xf]
    %v349 = vld [vmem:[%s345 + $0xc] sm:$0xf]
    %v350 = vld [vmem:[%s345 + $0x10] sm:$0xf]
    %v351 = vld [vmem:[%s345 + $0x14] sm:$0xf]
    %v352 = vld [vmem:[%s345 + $0x18] sm:$0xf]
    %v353 = vld [vmem:[%s345 + $0x1c] sm:$0xf]
    %v362 = vunpack.c.l.b16 %v346
    %v363 = vunpack.c.l.b16 %v347
    %v364 = vunpack.c.l.b16 %v348
    %v365 = vunpack.c.l.b16 %v349
    %v366 = vunpack.c.l.b16 %v350
    %v367 = vunpack.c.l.b16 %v351
    %v368 = vunpack.c.l.b16 %v352
    %v369 = vunpack.c.l.b16 %v353
    %v370 = vpack.c.b16 %v363, %v362
    %v371 = vpack.c.b16 %v365, %v364
    %v372 = vpack.c.b16 %v367, %v366
    %v373 = vpack.c.b16 %v369, %v368
    %v379 = vsel %vm117, %v343, 0
    %v382 = vsel %vm117, %v344, 0
    %384 = vmatprep.subr.bf16.mxu0 0
    %385 = vmatpush1.bf16.msra.mxu0 0
    %386 = vmatprep.subr.bf16.mxu0 0
    %387 = vmatpush1.bf16.msra.mxu0 0
    %388 = vmatprep.subr.bf16.mxu0 0
    %389 = vmatpush1.bf16.msra.mxu0 0
    %390 = vmatprep.subr.bf16.mxu0 0
    %391 = vmatpush1.bf16.msra.mxu0 0
    %392 = vmatprep.subr.bf16.mxu0 0
    %393 = vmatpush1.bf16.msra.mxu0 %v373
    %394 = vmatprep.subr.bf16.mxu0 0
    %395 = vmatpush1.bf16.msra.mxu0 %v372
    %396 = vmatprep.subr.bf16.mxu0 0
    %397 = vmatpush1.bf16.msra.mxu0 %v371
    %398 = vmatprep.subr.bf16.mxu0 0
    %399 = vmatpush1.bf16.msra.mxu0 %v370
    %400 = vmatprep.subr.bf16.mxu0 0
    %401 = vmatpush2.bf16.msra.mxu0 0
    %402 = vmatprep.subr.bf16.mxu0 0
    %403 = vmatpush2.bf16.msra.mxu0 0
    %404 = vmatprep.subr.bf16.mxu0 0
    %405 = vmatpush2.bf16.msra.mxu0 0
    %406 = vmatprep.subr.bf16.mxu0 0
    %407 = vmatpush2.bf16.msra.mxu0 0
    %408 = vmatprep.subr.bf16.mxu0 0
    %409 = vmatpush2.bf16.msra.mxu0 0
    %410 = vmatprep.subr.bf16.mxu0 0
    %411 = vmatpush2.bf16.msra.mxu0 0
    %412 = vmatprep.subr.bf16.mxu0 0
    %413 = vmatpush2.bf16.msra.mxu0 0
    %414 = vmatprep.subr.bf16.mxu0 0
    %415 = vmatpush2.bf16.msra.mxu0 0
    %416 = vmatprep.mubr.bf16.mxu0 0
    %417 = vmatmul.mubr.bf16.gmra.mxu0 %v379
    %v418 = vpop.f32.mrf.mxu0
    %v419 = vadd.f32 0.0, %v418
    %v420 = vpop.f32.mrf.mxu0
    %v421 = vpop.f32.mrf.mxu0
    %v422 = vadd.f32 0.0, %v421
    %v423 = vpop.f32.mrf.mxu0
    %424 = vmatprep.mubr.bf16.mxu0 0
    %425 = vmatmul.mubr.bf16.gmra.mxu0 %v382
    %v426 = vpop.f32.mrf.mxu0
    %v427 = vadd.f32 0.0, %v426
    %v428 = vpop.f32.mrf.mxu0
    %v429 = vpop.f32.mrf.mxu0
    %v430 = vadd.f32 0.0, %v429
    %v431 = vpop.f32.mrf.mxu0
    %432 = vdwg.mxu0
    %v433 = vadd.f32 %v314, %v419
    %v434 = vadd.f32 %v317, %v422
    %v435 = vadd.f32 %v322, %v427
    %v436 = vadd.f32 %v325, %v430
    %v437 = vld [vmem:[%s2] sm:$0x1]
    %v439 = vlaneseq
    %v440 = vshrl.u32 %v439, 7
    %v441 = vsub.s32 0, %v440
    %v442 = vrot.slane %v437, %v441
    %v444 = vadd.f32 %v433, %v442
    %v445 = vadd.f32 %v434, %v442
    %v446 = vadd.f32 %v435, %v442
    %v447 = vadd.f32 %v436, %v442
    %v448 = vmax.f32 %v444, 0.0
    %v449 = vmax.f32 %v445, 0.0
    %v450 = vmax.f32 %v446, 0.0
    %v451 = vmax.f32 %v447, 0.0
    %v452 = vld [vmem:[#allocation9] sm:$0xff]
    %v453 = vld [vmem:[#allocation9 + $0x8] sm:$0xff]
    %v454 = vld [vmem:[#allocation9 + $0x10] sm:$0xff]
    %v455 = vld [vmem:[#allocation9 + $0x18] sm:$0xff]
    %v456 = vld [vmem:[#allocation9 + $0x20] sm:$0xff]
    %v457 = vld [vmem:[#allocation9 + $0x28] sm:$0xff]
    %v458 = vld [vmem:[#allocation9 + $0x30] sm:$0xff]
    %v459 = vld [vmem:[#allocation9 + $0x38] sm:$0xff]
    %v460 = vld [vmem:[#allocation9 + $0x40] sm:$0xff]
    %v461 = vld [vmem:[#allocation9 + $0x48] sm:$0xff]
    %v462 = vld [vmem:[#allocation9 + $0x50] sm:$0xff]
    %v463 = vld [vmem:[#allocation9 + $0x58] sm:$0xff]
    %v464 = vld [vmem:[#allocation9 + $0x60] sm:$0xff]
    %v465 = vld [vmem:[#allocation9 + $0x68] sm:$0xff]
    %v466 = vld [vmem:[#allocation9 + $0x70] sm:$0xff]
    %v467 = vld [vmem:[#allocation9 + $0x78] sm:$0xff]
    %v468 = vld [vmem:[%s3] sm:$0x1]
    %v469 = vld [vmem:[%s4] sm:$0x1]
    %v470 = vadd.f32 %v448, %v449
    %v471 = vadd.f32 %v470, %v450
    %v472 = vadd.f32 %v471, %v451
    %v473 = vrot.slane %v472, 4
    %v474 = vadd.f32 %v472, %v473
    %v475 = vrot.slane %v474, 2
    %v476 = vadd.f32 %v474, %v475
    %v477 = vrot.slane %v476, 1
    %v478 = vadd.f32 %v476, %v477
    %479 = vmatprep.subr.mxu0 0.0
    %480 = vmatpush1.msra.mxu0 %v467
    %481 = vmatprep.subr.mxu0 0.0
    %482 = vmatpush1.msra.mxu0 %v466
    %483 = vmatprep.subr.mxu0 0.0
    %484 = vmatpush1.msra.mxu0 %v465
    %485 = vmatprep.subr.mxu0 0.0
    %486 = vmatpush1.msra.mxu0 %v464
    %487 = vmatprep.subr.mxu0 0.0
    %488 = vmatpush1.msra.mxu0 %v463
    %489 = vmatprep.subr.mxu0 0.0
    %490 = vmatpush1.msra.mxu0 %v462
    %491 = vmatprep.subr.mxu0 0.0
    %492 = vmatpush1.msra.mxu0 %v461
    %493 = vmatprep.subr.mxu0 0.0
    %494 = vmatpush1.msra.mxu0 %v460
    %495 = vmatprep.subr.mxu0 0.0
    %496 = vmatpush1.msra.mxu0 %v459
    %497 = vmatprep.subr.mxu0 0.0
    %498 = vmatpush1.msra.mxu0 %v458
    %499 = vmatprep.subr.mxu0 0.0
    %500 = vmatpush1.msra.mxu0 %v457
    %501 = vmatprep.subr.mxu0 0.0
    %502 = vmatpush1.msra.mxu0 %v456
    %503 = vmatprep.subr.mxu0 0.0
    %504 = vmatpush1.msra.mxu0 %v455
    %505 = vmatprep.subr.mxu0 0.0
    %506 = vmatpush1.msra.mxu0 %v454
    %507 = vmatprep.subr.mxu0 0.0
    %508 = vmatpush1.msra.mxu0 %v453
    %509 = vmatprep.subr.mxu0 0.0
    %510 = vmatpush1.msra.mxu0 %v452
    %511 = vmatprep.subr.mxu0 0.0
    %512 = vmatpush2.msra.mxu0 0.0
    %513 = vmatprep.subr.mxu0 0.0
    %514 = vmatpush2.msra.mxu0 0.0
    %515 = vmatprep.subr.mxu0 0.0
    %516 = vmatpush2.msra.mxu0 0.0
    %517 = vmatprep.subr.mxu0 0.0
    %518 = vmatpush2.msra.mxu0 0.0
    %519 = vmatprep.subr.mxu0 0.0
    %520 = vmatpush2.msra.mxu0 0.0
    %521 = vmatprep.subr.mxu0 0.0
    %522 = vmatpush2.msra.mxu0 0.0
    %523 = vmatprep.subr.mxu0 0.0
    %524 = vmatpush2.msra.mxu0 0.0
    %525 = vmatprep.subr.mxu0 0.0
    %526 = vmatpush2.msra.mxu0 0.0
    %527 = vmatprep.subr.mxu0 0.0
    %528 = vmatpush2.msra.mxu0 0.0
    %529 = vmatprep.subr.mxu0 0.0
    %530 = vmatpush2.msra.mxu0 0.0
    %531 = vmatprep.subr.mxu0 0.0
    %532 = vmatpush2.msra.mxu0 0.0
    %533 = vmatprep.subr.mxu0 0.0
    %534 = vmatpush2.msra.mxu0 0.0
    %535 = vmatprep.subr.mxu0 0.0
    %536 = vmatpush2.msra.mxu0 0.0
    %537 = vmatprep.subr.mxu0 0.0
    %538 = vmatpush2.msra.mxu0 0.0
    %539 = vmatprep.subr.mxu0 0.0
    %540 = vmatpush2.msra.mxu0 0.0
    %541 = vmatprep.subr.mxu0 0.0
    %542 = vmatpush2.msra.mxu0 0.0
    %543 = vmatprep.mubr.f32.mxu0 0.0
    %544 = vmatmul.mubr.f32.gmra.mxu0 %v478
    %v545 = vpop.f32.mrf.mxu0
    %v546 = vadd.f32 0.0, %v545
    %v547 = vpop.f32.mrf.mxu0
    %548 = vdwg.mxu0
    %v549 = vrcp.pop 512.0
    %v550 = vmul.f32 %v546, %v549
    %v551 = vlaneseq
    %v552 = vshrl.u32 %v551, 7
    %v553 = vsub.s32 0, %v552
    %v554 = vrot.slane %v550, %v553
    %v555 = vsub.f32 %v448, %v554
    %v556 = vsub.f32 %v449, %v554
    %v557 = vsub.f32 %v450, %v554
    %v558 = vsub.f32 %v451, %v554
    %v559 = vmul.f32 %v555, %v555
    %v560 = vmul.f32 %v556, %v556
    %v561 = vmul.f32 %v557, %v557
    %v562 = vmul.f32 %v558, %v558
    %v563 = vadd.f32 %v559, %v560
    %v564 = vadd.f32 %v563, %v561
    %v565 = vadd.f32 %v564, %v562
    %v566 = vrot.slane %v565, 4
    %v567 = vadd.f32 %v565, %v566
    %v568 = vrot.slane %v567, 2
    %v569 = vadd.f32 %v567, %v568
    %v570 = vrot.slane %v569, 1
    %v571 = vadd.f32 %v569, %v570
    %572 = vmatprep.subr.mxu0 0.0
    %573 = vmatpush1.msra.mxu0 %v467
    %574 = vmatprep.subr.mxu0 0.0
    %575 = vmatpush1.msra.mxu0 %v466
    %576 = vmatprep.subr.mxu0 0.0
    %577 = vmatpush1.msra.mxu0 %v465
    %578 = vmatprep.subr.mxu0 0.0
    %579 = vmatpush1.msra.mxu0 %v464
    %580 = vmatprep.subr.mxu0 0.0
    %581 = vmatpush1.msra.mxu0 %v463
    %582 = vmatprep.subr.mxu0 0.0
    %583 = vmatpush1.msra.mxu0 %v462
    %584 = vmatprep.subr.mxu0 0.0
    %585 = vmatpush1.msra.mxu0 %v461
    %586 = vmatprep.subr.mxu0 0.0
    %587 = vmatpush1.msra.mxu0 %v460
    %588 = vmatprep.subr.mxu0 0.0
    %589 = vmatpush1.msra.mxu0 %v459
    %590 = vmatprep.subr.mxu0 0.0
    %591 = vmatpush1.msra.mxu0 %v458
    %592 = vmatprep.subr.mxu0 0.0
    %593 = vmatpush1.msra.mxu0 %v457
    %594 = vmatprep.subr.mxu0 0.0
    %595 = vmatpush1.msra.mxu0 %v456
    %596 = vmatprep.subr.mxu0 0.0
    %597 = vmatpush1.msra.mxu0 %v455
    %598 = vmatprep.subr.mxu0 0.0
    %599 = vmatpush1.msra.mxu0 %v454
    %600 = vmatprep.subr.mxu0 0.0
    %601 = vmatpush1.msra.mxu0 %v453
    %602 = vmatprep.subr.mxu0 0.0
    %603 = vmatpush1.msra.mxu0 %v452
    %604 = vmatprep.subr.mxu0 0.0
    %605 = vmatpush2.msra.mxu0 0.0
    %606 = vmatprep.subr.mxu0 0.0
    %607 = vmatpush2.msra.mxu0 0.0
    %608 = vmatprep.subr.mxu0 0.0
    %609 = vmatpush2.msra.mxu0 0.0
    %610 = vmatprep.subr.mxu0 0.0
    %611 = vmatpush2.msra.mxu0 0.0
    %612 = vmatprep.subr.mxu0 0.0
    %613 = vmatpush2.msra.mxu0 0.0
    %614 = vmatprep.subr.mxu0 0.0
    %615 = vmatpush2.msra.mxu0 0.0
    %616 = vmatprep.subr.mxu0 0.0
    %617 = vmatpush2.msra.mxu0 0.0
    %618 = vmatprep.subr.mxu0 0.0
    %619 = vmatpush2.msra.mxu0 0.0
    %620 = vmatprep.subr.mxu0 0.0
    %621 = vmatpush2.msra.mxu0 0.0
    %622 = vmatprep.subr.mxu0 0.0
    %623 = vmatpush2.msra.mxu0 0.0
    %624 = vmatprep.subr.mxu0 0.0
    %625 = vmatpush2.msra.mxu0 0.0
    %626 = vmatprep.subr.mxu0 0.0
    %627 = vmatpush2.msra.mxu0 0.0
    %628 = vmatprep.subr.mxu0 0.0
    %629 = vmatpush2.msra.mxu0 0.0
    %630 = vmatprep.subr.mxu0 0.0
    %631 = vmatpush2.msra.mxu0 0.0
    %632 = vmatprep.subr.mxu0 0.0
    %633 = vmatpush2.msra.mxu0 0.0
    %634 = vmatprep.subr.mxu0 0.0
    %635 = vmatpush2.msra.mxu0 0.0
    %636 = vmatprep.mubr.f32.mxu0 0.0
    %637 = vmatmul.mubr.f32.gmra.mxu0 %v571
    %v638 = vpop.f32.mrf.mxu0
    %v639 = vadd.f32 0.0, %v638
    %v640 = vpop.f32.mrf.mxu0
    %641 = vdwg.mxu0
    %v642 = vmul.f32 %v639, %v549
    %v643 = vadd.f32 %v642, 1e-05
    %v644 = vrsqrt.pop %v643
    %v645 = vmul.f32 %v644, %v468
    %v646 = vlaneseq
    %v647 = vshrl.u32 %v646, 7
    %v648 = vsub.s32 0, %v647
    %v649 = vrot.slane %v645, %v648
    %v650 = vmul.f32 %v555, %v649
    %v651 = vmul.f32 %v556, %v649
    %v652 = vmul.f32 %v557, %v649
    %v653 = vmul.f32 %v558, %v649
    %v655 = vlaneseq
    %v656 = vshrl.u32 %v655, 7
    %v657 = vsub.s32 0, %v656
    %v658 = vrot.slane %v469, %v657
    %v660 = vadd.f32 %v650, %v658
    %v661 = vadd.f32 %v651, %v658
    %v662 = vadd.f32 %v652, %v658
    %v663 = vadd.f32 %v653, %v658
    %664 = vst [vmem:[#allocation3] sm:$0x1] 0.0
    %665 = vst [vmem:[#allocation3 + $0x18] sm:$0x1] 0.0
    %666 = vst [vmem:[#allocation3 + $0x11] sm:$0x1] 0.0
    %667 = vst [vmem:[#allocation3 + $0x29] sm:$0x1] 0.0
    %668 = vst [vmem:[#allocation3 + $0x1] sm:$0xff] %v660
    %669 = vst [vmem:[#allocation3 + $0x9] sm:$0xff] %v661
    %670 = vst [vmem:[#allocation3 + $0x19] sm:$0xff] %v662
    %671 = vst [vmem:[#allocation3 + $0x21] sm:$0xff] %v663
    %v672 = vld [vmem:[#allocation3] sm:$0xff]
    %v673 = vld [vmem:[#allocation3 + $0x8] sm:$0xff]
    %v674 = vld [vmem:[#allocation3 + $0x10] sm:$0x3]
    %v675 = vld [vmem:[#allocation3 + $0x18] sm:$0xff]
    %v676 = vld [vmem:[#allocation3 + $0x20] sm:$0xff]
    %v677 = vld [vmem:[#allocation3 + $0x28] sm:$0x3]
    %v678 = vpack.c.bf16 %v673, %v672
    %v679 = vpack.c.bf16 %v676, %v675
    %v680 = vld [vmem:[#allocation10] sm:$0xf]
    %v681 = vld [vmem:[#allocation10 + $0x4] sm:$0xf]
    %v682 = vld [vmem:[#allocation10 + $0x8] sm:$0xf]
    %v683 = vld [vmem:[#allocation10 + $0xc] sm:$0xf]
    %v684 = vld [vmem:[#allocation10 + $0x10] sm:$0xf]
    %v685 = vld [vmem:[#allocation10 + $0x14] sm:$0xf]
    %v686 = vld [vmem:[#allocation10 + $0x18] sm:$0xf]
    %v687 = vld [vmem:[#allocation10 + $0x1c] sm:$0xf]
    %v688 = vld [vmem:[#allocation10 + $0x20] sm:$0xf]
    %v689 = vld [vmem:[#allocation10 + $0x24] sm:$0xf]
    %v690 = vld [vmem:[#allocation10 + $0x28] sm:$0xf]
    %v691 = vld [vmem:[#allocation10 + $0x2c] sm:$0xf]
    %v692 = vld [vmem:[#allocation10 + $0x30] sm:$0xf]
    %v693 = vld [vmem:[#allocation10 + $0x34] sm:$0xf]
    %v694 = vld [vmem:[#allocation10 + $0x38] sm:$0xf]
    %v695 = vld [vmem:[#allocation10 + $0x3c] sm:$0xf]
    %v702 = vrot.slane %v672, 1
    %v703 = vrot.slane %v673, 1
    %v704 = vsel %vm144, %v702, %v703
    %v705 = vrot.slane %v674, 1
    %v706 = vsel %vm144, %v703, %v705
    %v707 = vrot.slane %v675, 1
    %v708 = vrot.slane %v676, 1
    %v709 = vsel %vm144, %v707, %v708
    %v710 = vrot.slane %v677, 1
    %v711 = vsel %vm144, %v708, %v710
    %v716 = vpack.c.bf16 %v706, %v704
    %v717 = vpack.c.bf16 %v711, %v709
    %s718 = scalar_lea.vmem [#allocation10], 64
    %v719 = vld [vmem:[%s718] sm:$0xf]
    %v720 = vld [vmem:[%s718 + $0x4] sm:$0xf]
    %v721 = vld [vmem:[%s718 + $0x8] sm:$0xf]
    %v722 = vld [vmem:[%s718 + $0xc] sm:$0xf]
    %v723 = vld [vmem:[%s718 + $0x10] sm:$0xf]
    %v724 = vld [vmem:[%s718 + $0x14] sm:$0xf]
    %v725 = vld [vmem:[%s718 + $0x18] sm:$0xf]
    %v726 = vld [vmem:[%s718 + $0x1c] sm:$0xf]
    %v727 = vld [vmem:[%s718 + $0x20] sm:$0xf]
    %v728 = vld [vmem:[%s718 + $0x24] sm:$0xf]
    %v729 = vld [vmem:[%s718 + $0x28] sm:$0xf]
    %v730 = vld [vmem:[%s718 + $0x2c] sm:$0xf]
    %v731 = vld [vmem:[%s718 + $0x30] sm:$0xf]
    %v732 = vld [vmem:[%s718 + $0x34] sm:$0xf]
    %v733 = vld [vmem:[%s718 + $0x38] sm:$0xf]
    %v734 = vld [vmem:[%s718 + $0x3c] sm:$0xf]
    %v751 = vunpack.c.l.b16 %v719
    %v752 = vunpack.c.l.b16 %v720
    %v753 = vunpack.c.l.b16 %v721
    %v754 = vunpack.c.l.b16 %v722
    %v755 = vunpack.c.l.b16 %v723
    %v756 = vunpack.c.l.b16 %v724
    %v757 = vunpack.c.l.b16 %v725
    %v758 = vunpack.c.l.b16 %v726
    %v759 = vunpack.c.l.b16 %v727
    %v760 = vunpack.c.l.b16 %v728
    %v761 = vunpack.c.l.b16 %v729
    %v762 = vunpack.c.l.b16 %v730
    %v763 = vunpack.c.l.b16 %v731
    %v764 = vunpack.c.l.b16 %v732
    %v765 = vunpack.c.l.b16 %v733
    %v766 = vunpack.c.l.b16 %v734
    %v767 = vpack.c.b16 %v752, %v751
    %v768 = vpack.c.b16 %v754, %v753
    %v769 = vpack.c.b16 %v756, %v755
    %v770 = vpack.c.b16 %v758, %v757
    %v771 = vpack.c.b16 %v760, %v759
    %v772 = vpack.c.b16 %v762, %v761
    %v773 = vpack.c.b16 %v764, %v763
    %v774 = vpack.c.b16 %v766, %v765
    %783 = vmatprep.subr.bf16.mxu0 0
    %784 = vmatpush1.bf16.msra.mxu0 %v774
    %785 = vmatprep.subr.bf16.mxu0 0
    %786 = vmatpush1.bf16.msra.mxu0 %v773
    %787 = vmatprep.subr.bf16.mxu0 0
    %788 = vmatpush1.bf16.msra.mxu0 %v772
    %789 = vmatprep.subr.bf16.mxu0 0
    %790 = vmatpush1.bf16.msra.mxu0 %v771
    %791 = vmatprep.subr.bf16.mxu0 0
    %792 = vmatpush1.bf16.msra.mxu0 %v770
    %793 = vmatprep.subr.bf16.mxu0 0
    %794 = vmatpush1.bf16.msra.mxu0 %v769
    %795 = vmatprep.subr.bf16.mxu0 0
    %796 = vmatpush1.bf16.msra.mxu0 %v768
    %797 = vmatprep.subr.bf16.mxu0 0
    %798 = vmatpush1.bf16.msra.mxu0 %v767
    %799 = vmatprep.subr.bf16.mxu0 0
    %800 = vmatpush2.bf16.msra.mxu0 0
    %801 = vmatprep.subr.bf16.mxu0 0
    %802 = vmatpush2.bf16.msra.mxu0 0
    %803 = vmatprep.subr.bf16.mxu0 0
    %804 = vmatpush2.bf16.msra.mxu0 0
    %805 = vmatprep.subr.bf16.mxu0 0
    %806 = vmatpush2.bf16.msra.mxu0 0
    %807 = vmatprep.subr.bf16.mxu0 0
    %808 = vmatpush2.bf16.msra.mxu0 0
    %809 = vmatprep.subr.bf16.mxu0 0
    %810 = vmatpush2.bf16.msra.mxu0 0
    %811 = vmatprep.subr.bf16.mxu0 0
    %812 = vmatpush2.bf16.msra.mxu0 0
    %813 = vmatprep.subr.bf16.mxu0 0
    %814 = vmatpush2.bf16.msra.mxu0 0
    %815 = vmatprep.mubr.bf16.mxu0 0
    %816 = vmatmul.mubr.bf16.gmra.mxu0 %v716
    %v817 = vpop.f32.mrf.mxu0
    %v818 = vadd.f32 0.0, %v817
    %v819 = vpop.f32.mrf.mxu0
    %v820 = vpop.f32.mrf.mxu0
    %v821 = vadd.f32 0.0, %v820
    %v822 = vpop.f32.mrf.mxu0
    %823 = vmatprep.mubr.bf16.mxu0 0
    %824 = vmatmul.mubr.bf16.gmra.mxu0 %v717
    %v825 = vpop.f32.mrf.mxu0
    %v826 = vadd.f32 0.0, %v825
    %v827 = vpop.f32.mrf.mxu0
    %v828 = vpop.f32.mrf.mxu0
    %v829 = vadd.f32 0.0, %v828
    %v830 = vpop.f32.mrf.mxu0
    %831 = vdwg.mxu0
    %v848 = vunpack.c.l.b16 %v680
    %v849 = vunpack.c.l.b16 %v681
    %v850 = vunpack.c.l.b16 %v682
    %v851 = vunpack.c.l.b16 %v683
    %v852 = vunpack.c.l.b16 %v684
    %v853 = vunpack.c.l.b16 %v685
    %v854 = vunpack.c.l.b16 %v686
    %v855 = vunpack.c.l.b16 %v687
    %v856 = vunpack.c.l.b16 %v688
    %v857 = vunpack.c.l.b16 %v689
    %v858 = vunpack.c.l.b16 %v690
    %v859 = vunpack.c.l.b16 %v691
    %v860 = vunpack.c.l.b16 %v692
    %v861 = vunpack.c.l.b16 %v693
    %v862 = vunpack.c.l.b16 %v694
    %v863 = vunpack.c.l.b16 %v695
    %v864 = vpack.c.b16 %v849, %v848
    %v865 = vpack.c.b16 %v851, %v850
    %v866 = vpack.c.b16 %v853, %v852
    %v867 = vpack.c.b16 %v855, %v854
    %v868 = vpack.c.b16 %v857, %v856
    %v869 = vpack.c.b16 %v859, %v858
    %v870 = vpack.c.b16 %v861, %v860
    %v871 = vpack.c.b16 %v863, %v862
    %880 = vmatprep.subr.bf16.mxu0 0
    %881 = vmatpush1.bf16.msra.mxu0 %v871
    %882 = vmatprep.subr.bf16.mxu0 0
    %883 = vmatpush1.bf16.msra.mxu0 %v870
    %884 = vmatprep.subr.bf16.mxu0 0
    %885 = vmatpush1.bf16.msra.mxu0 %v869
    %886 = vmatprep.subr.bf16.mxu0 0
    %887 = vmatpush1.bf16.msra.mxu0 %v868
    %888 = vmatprep.subr.bf16.mxu0 0
    %889 = vmatpush1.bf16.msra.mxu0 %v867
    %890 = vmatprep.subr.bf16.mxu0 0
    %891 = vmatpush1.bf16.msra.mxu0 %v866
    %892 = vmatprep.subr.bf16.mxu0 0
    %893 = vmatpush1.bf16.msra.mxu0 %v865
    %894 = vmatprep.subr.bf16.mxu0 0
    %895 = vmatpush1.bf16.msra.mxu0 %v864
    %896 = vmatprep.subr.bf16.mxu0 0
    %897 = vmatpush2.bf16.msra.mxu0 0
    %898 = vmatprep.subr.bf16.mxu0 0
    %899 = vmatpush2.bf16.msra.mxu0 0
    %900 = vmatprep.subr.bf16.mxu0 0
    %901 = vmatpush2.bf16.msra.mxu0 0
    %902 = vmatprep.subr.bf16.mxu0 0
    %903 = vmatpush2.bf16.msra.mxu0 0
    %904 = vmatprep.subr.bf16.mxu0 0
    %905 = vmatpush2.bf16.msra.mxu0 0
    %906 = vmatprep.subr.bf16.mxu0 0
    %907 = vmatpush2.bf16.msra.mxu0 0
    %908 = vmatprep.subr.bf16.mxu0 0
    %909 = vmatpush2.bf16.msra.mxu0 0
    %910 = vmatprep.subr.bf16.mxu0 0
    %911 = vmatpush2.bf16.msra.mxu0 0
    %912 = vmatprep.mubr.bf16.mxu0 0
    %913 = vmatmul.mubr.bf16.gmra.mxu0 %v678
    %v914 = vpop.f32.mrf.mxu0
    %v915 = vadd.f32 %v818, %v914
    %v916 = vpop.f32.mrf.mxu0
    %v917 = vpop.f32.mrf.mxu0
    %v918 = vadd.f32 %v821, %v917
    %v919 = vpop.f32.mrf.mxu0
    %920 = vmatprep.mubr.bf16.mxu0 0
    %921 = vmatmul.mubr.bf16.gmra.mxu0 %v679
    %v922 = vpop.f32.mrf.mxu0
    %v923 = vadd.f32 %v826, %v922
    %v924 = vpop.f32.mrf.mxu0
    %v925 = vpop.f32.mrf.mxu0
    %v926 = vadd.f32 %v829, %v925
    %v927 = vpop.f32.mrf.mxu0
    %928 = vdwg.mxu0
    %v929 = vrot.slane %v672, 2
    %v930 = vrot.slane %v673, 2
    %v931 = vsel %vm328, %v929, %v930
    %v932 = vrot.slane %v674, 2
    %v933 = vsel %vm328, %v930, %v932
    %v934 = vrot.slane %v675, 2
    %v935 = vrot.slane %v676, 2
    %v936 = vsel %vm328, %v934, %v935
    %v937 = vrot.slane %v677, 2
    %v938 = vsel %vm328, %v935, %v937
    %v943 = vpack.c.bf16 %v933, %v931
    %v944 = vpack.c.bf16 %v938, %v936
    %s945 = scalar_lea.vmem [#allocation10], 128
    %v946 = vld [vmem:[%s945] sm:$0xf]
    %v947 = vld [vmem:[%s945 + $0x4] sm:$0xf]
    %v948 = vld [vmem:[%s945 + $0x8] sm:$0xf]
    %v949 = vld [vmem:[%s945 + $0xc] sm:$0xf]
    %v950 = vld [vmem:[%s945 + $0x10] sm:$0xf]
    %v951 = vld [vmem:[%s945 + $0x14] sm:$0xf]
    %v952 = vld [vmem:[%s945 + $0x18] sm:$0xf]
    %v953 = vld [vmem:[%s945 + $0x1c] sm:$0xf]
    %v954 = vld [vmem:[%s945 + $0x20] sm:$0xf]
    %v955 = vld [vmem:[%s945 + $0x24] sm:$0xf]
    %v956 = vld [vmem:[%s945 + $0x28] sm:$0xf]
    %v957 = vld [vmem:[%s945 + $0x2c] sm:$0xf]
    %v958 = vld [vmem:[%s945 + $0x30] sm:$0xf]
    %v959 = vld [vmem:[%s945 + $0x34] sm:$0xf]
    %v960 = vld [vmem:[%s945 + $0x38] sm:$0xf]
    %v961 = vld [vmem:[%s945 + $0x3c] sm:$0xf]
    %v978 = vunpack.c.l.b16 %v946
    %v979 = vunpack.c.l.b16 %v947
    %v980 = vunpack.c.l.b16 %v948
    %v981 = vunpack.c.l.b16 %v949
    %v982 = vunpack.c.l.b16 %v950
    %v983 = vunpack.c.l.b16 %v951
    %v984 = vunpack.c.l.b16 %v952
    %v985 = vunpack.c.l.b16 %v953
    %v986 = vunpack.c.l.b16 %v954
    %v987 = vunpack.c.l.b16 %v955
    %v988 = vunpack.c.l.b16 %v956
    %v989 = vunpack.c.l.b16 %v957
    %v990 = vunpack.c.l.b16 %v958
    %v991 = vunpack.c.l.b16 %v959
    %v992 = vunpack.c.l.b16 %v960
    %v993 = vunpack.c.l.b16 %v961
    %v994 = vpack.c.b16 %v979, %v978
    %v995 = vpack.c.b16 %v981, %v980
    %v996 = vpack.c.b16 %v983, %v982
    %v997 = vpack.c.b16 %v985, %v984
    %v998 = vpack.c.b16 %v987, %v986
    %v999 = vpack.c.b16 %v989, %v988
    %v1000 = vpack.c.b16 %v991, %v990
    %v1001 = vpack.c.b16 %v993, %v992
    %1010 = vmatprep.subr.bf16.mxu0 0
    %1011 = vmatpush1.bf16.msra.mxu0 %v1001
    %1012 = vmatprep.subr.bf16.mxu0 0
    %1013 = vmatpush1.bf16.msra.mxu0 %v1000
    %1014 = vmatprep.subr.bf16.mxu0 0
    %1015 = vmatpush1.bf16.msra.mxu0 %v999
    %1016 = vmatprep.subr.bf16.mxu0 0
    %1017 = vmatpush1.bf16.msra.mxu0 %v998
    %1018 = vmatprep.subr.bf16.mxu0 0
    %1019 = vmatpush1.bf16.msra.mxu0 %v997
    %1020 = vmatprep.subr.bf16.mxu0 0
    %1021 = vmatpush1.bf16.msra.mxu0 %v996
    %1022 = vmatprep.subr.bf16.mxu0 0
    %1023 = vmatpush1.bf16.msra.mxu0 %v995
    %1024 = vmatprep.subr.bf16.mxu0 0
    %1025 = vmatpush1.bf16.msra.mxu0 %v994
    %1026 = vmatprep.subr.bf16.mxu0 0
    %1027 = vmatpush2.bf16.msra.mxu0 0
    %1028 = vmatprep.subr.bf16.mxu0 0
    %1029 = vmatpush2.bf16.msra.mxu0 0
    %1030 = vmatprep.subr.bf16.mxu0 0
    %1031 = vmatpush2.bf16.msra.mxu0 0
    %1032 = vmatprep.subr.bf16.mxu0 0
    %1033 = vmatpush2.bf16.msra.mxu0 0
    %1034 = vmatprep.subr.bf16.mxu0 0
    %1035 = vmatpush2.bf16.msra.mxu0 0
    %1036 = vmatprep.subr.bf16.mxu0 0
    %1037 = vmatpush2.bf16.msra.mxu0 0
    %1038 = vmatprep.subr.bf16.mxu0 0
    %1039 = vmatpush2.bf16.msra.mxu0 0
    %1040 = vmatprep.subr.bf16.mxu0 0
    %1041 = vmatpush2.bf16.msra.mxu0 0
    %1042 = vmatprep.mubr.bf16.mxu0 0
    %1043 = vmatmul.mubr.bf16.gmra.mxu0 %v943
    %v1044 = vpop.f32.mrf.mxu0
    %v1045 = vadd.f32 0.0, %v1044
    %v1046 = vpop.f32.mrf.mxu0
    %v1047 = vpop.f32.mrf.mxu0
    %v1048 = vadd.f32 0.0, %v1047
    %v1049 = vpop.f32.mrf.mxu0
    %1050 = vmatprep.mubr.bf16.mxu0 0
    %1051 = vmatmul.mubr.bf16.gmra.mxu0 %v944
    %v1052 = vpop.f32.mrf.mxu0
    %v1053 = vadd.f32 0.0, %v1052
    %v1054 = vpop.f32.mrf.mxu0
    %v1055 = vpop.f32.mrf.mxu0
    %v1056 = vadd.f32 0.0, %v1055
    %v1057 = vpop.f32.mrf.mxu0
    %1058 = vdwg.mxu0
    %v1059 = vadd.f32 %v915, %v1045
    %v1060 = vadd.f32 %v918, %v1048
    %v1061 = vadd.f32 %v923, %v1053
    %v1062 = vadd.f32 %v926, %v1056
    %v1063 = vld [vmem:[%s7] sm:$0x1]
    %v1065 = vlaneseq
    %v1066 = vshrl.u32 %v1065, 7
    %v1067 = vsub.s32 0, %v1066
    %v1068 = vrot.slane %v1063, %v1067
    %v1070 = vadd.f32 %v1059, %v1068
    %v1071 = vadd.f32 %v1060, %v1068
    %v1072 = vadd.f32 %v1061, %v1068
    %v1073 = vadd.f32 %v1062, %v1068
    %v1074 = vmax.f32 %v1070, 0.0
    %v1075 = vmax.f32 %v1071, 0.0
    %v1076 = vmax.f32 %v1072, 0.0
    %v1077 = vmax.f32 %v1073, 0.0
    %v1078 = vld [vmem:[#allocation12] sm:$0xff]
    %v1079 = vld [vmem:[#allocation12 + $0x8] sm:$0xff]
    %v1080 = vld [vmem:[#allocation12 + $0x10] sm:$0xff]
    %v1081 = vld [vmem:[#allocation12 + $0x18] sm:$0xff]
    %v1082 = vld [vmem:[#allocation12 + $0x20] sm:$0xff]
    %v1083 = vld [vmem:[#allocation12 + $0x28] sm:$0xff]
    %v1084 = vld [vmem:[#allocation12 + $0x30] sm:$0xff]
    %v1085 = vld [vmem:[#allocation12 + $0x38] sm:$0xff]
    %v1086 = vld [vmem:[#allocation12 + $0x40] sm:$0xff]
    %v1087 = vld [vmem:[#allocation12 + $0x48] sm:$0xff]
    %v1088 = vld [vmem:[#allocation12 + $0x50] sm:$0xff]
    %v1089 = vld [vmem:[#allocation12 + $0x58] sm:$0xff]
    %v1090 = vld [vmem:[#allocation12 + $0x60] sm:$0xff]
    %v1091 = vld [vmem:[#allocation12 + $0x68] sm:$0xff]
    %v1092 = vld [vmem:[#allocation12 + $0x70] sm:$0xff]
    %v1093 = vld [vmem:[#allocation12 + $0x78] sm:$0xff]
    %v1094 = vld [vmem:[%s8] sm:$0x1]
    %v1095 = vld [vmem:[%s9] sm:$0x1]
    %v1096 = vadd.f32 %v1074, %v1075
    %v1097 = vadd.f32 %v1096, %v1076
    %v1098 = vadd.f32 %v1097, %v1077
    %v1099 = vrot.slane %v1098, 4
    %v1100 = vadd.f32 %v1098, %v1099
    %v1101 = vrot.slane %v1100, 2
    %v1102 = vadd.f32 %v1100, %v1101
    %v1103 = vrot.slane %v1102, 1
    %v1104 = vadd.f32 %v1102, %v1103
    %1105 = vmatprep.subr.mxu0 0.0
    %1106 = vmatpush1.msra.mxu0 %v1093
    %1107 = vmatprep.subr.mxu0 0.0
    %1108 = vmatpush1.msra.mxu0 %v1092
    %1109 = vmatprep.subr.mxu0 0.0
    %1110 = vmatpush1.msra.mxu0 %v1091
    %1111 = vmatprep.subr.mxu0 0.0
    %1112 = vmatpush1.msra.mxu0 %v1090
    %1113 = vmatprep.subr.mxu0 0.0
    %1114 = vmatpush1.msra.mxu0 %v1089
    %1115 = vmatprep.subr.mxu0 0.0
    %1116 = vmatpush1.msra.mxu0 %v1088
    %1117 = vmatprep.subr.mxu0 0.0
    %1118 = vmatpush1.msra.mxu0 %v1087
    %1119 = vmatprep.subr.mxu0 0.0
    %1120 = vmatpush1.msra.mxu0 %v1086
    %1121 = vmatprep.subr.mxu0 0.0
    %1122 = vmatpush1.msra.mxu0 %v1085
    %1123 = vmatprep.subr.mxu0 0.0
    %1124 = vmatpush1.msra.mxu0 %v1084
    %1125 = vmatprep.subr.mxu0 0.0
    %1126 = vmatpush1.msra.mxu0 %v1083
    %1127 = vmatprep.subr.mxu0 0.0
    %1128 = vmatpush1.msra.mxu0 %v1082
    %1129 = vmatprep.subr.mxu0 0.0
    %1130 = vmatpush1.msra.mxu0 %v1081
    %1131 = vmatprep.subr.mxu0 0.0
    %1132 = vmatpush1.msra.mxu0 %v1080
    %1133 = vmatprep.subr.mxu0 0.0
    %1134 = vmatpush1.msra.mxu0 %v1079
    %1135 = vmatprep.subr.mxu0 0.0
    %1136 = vmatpush1.msra.mxu0 %v1078
    %1137 = vmatprep.subr.mxu0 0.0
    %1138 = vmatpush2.msra.mxu0 0.0
    %1139 = vmatprep.subr.mxu0 0.0
    %1140 = vmatpush2.msra.mxu0 0.0
    %1141 = vmatprep.subr.mxu0 0.0
    %1142 = vmatpush2.msra.mxu0 0.0
    %1143 = vmatprep.subr.mxu0 0.0
    %1144 = vmatpush2.msra.mxu0 0.0
    %1145 = vmatprep.subr.mxu0 0.0
    %1146 = vmatpush2.msra.mxu0 0.0
    %1147 = vmatprep.subr.mxu0 0.0
    %1148 = vmatpush2.msra.mxu0 0.0
    %1149 = vmatprep.subr.mxu0 0.0
    %1150 = vmatpush2.msra.mxu0 0.0
    %1151 = vmatprep.subr.mxu0 0.0
    %1152 = vmatpush2.msra.mxu0 0.0
    %1153 = vmatprep.subr.mxu0 0.0
    %1154 = vmatpush2.msra.mxu0 0.0
    %1155 = vmatprep.subr.mxu0 0.0
    %1156 = vmatpush2.msra.mxu0 0.0
    %1157 = vmatprep.subr.mxu0 0.0
    %1158 = vmatpush2.msra.mxu0 0.0
    %1159 = vmatprep.subr.mxu0 0.0
    %1160 = vmatpush2.msra.mxu0 0.0
    %1161 = vmatprep.subr.mxu0 0.0
    %1162 = vmatpush2.msra.mxu0 0.0
    %1163 = vmatprep.subr.mxu0 0.0
    %1164 = vmatpush2.msra.mxu0 0.0
    %1165 = vmatprep.subr.mxu0 0.0
    %1166 = vmatpush2.msra.mxu0 0.0
    %1167 = vmatprep.subr.mxu0 0.0
    %1168 = vmatpush2.msra.mxu0 0.0
    %1169 = vmatprep.mubr.f32.mxu0 0.0
    %1170 = vmatmul.mubr.f32.gmra.mxu0 %v1104
    %v1171 = vpop.f32.mrf.mxu0
    %v1172 = vadd.f32 0.0, %v1171
    %v1173 = vpop.f32.mrf.mxu0
    %1174 = vdwg.mxu0
    %v1175 = vmul.f32 %v1172, %v549
    %v1176 = vlaneseq
    %v1177 = vshrl.u32 %v1176, 7
    %v1178 = vsub.s32 0, %v1177
    %v1179 = vrot.slane %v1175, %v1178
    %v1180 = vsub.f32 %v1074, %v1179
    %v1181 = vsub.f32 %v1075, %v1179
    %v1182 = vsub.f32 %v1076, %v1179
    %v1183 = vsub.f32 %v1077, %v1179
    %v1184 = vmul.f32 %v1180, %v1180
    %v1185 = vmul.f32 %v1181, %v1181
    %v1186 = vmul.f32 %v1182, %v1182
    %v1187 = vmul.f32 %v1183, %v1183
    %v1188 = vadd.f32 %v1184, %v1185
    %v1189 = vadd.f32 %v1188, %v1186
    %v1190 = vadd.f32 %v1189, %v1187
    %v1191 = vrot.slane %v1190, 4
    %v1192 = vadd.f32 %v1190, %v1191
    %v1193 = vrot.slane %v1192, 2
    %v1194 = vadd.f32 %v1192, %v1193
    %v1195 = vrot.slane %v1194, 1
    %v1196 = vadd.f32 %v1194, %v1195
    %1197 = vmatprep.subr.mxu0 0.0
    %1198 = vmatpush1.msra.mxu0 %v1093
    %1199 = vmatprep.subr.mxu0 0.0
    %1200 = vmatpush1.msra.mxu0 %v1092
    %1201 = vmatprep.subr.mxu0 0.0
    %1202 = vmatpush1.msra.mxu0 %v1091
    %1203 = vmatprep.subr.mxu0 0.0
    %1204 = vmatpush1.msra.mxu0 %v1090
    %1205 = vmatprep.subr.mxu0 0.0
    %1206 = vmatpush1.msra.mxu0 %v1089
    %1207 = vmatprep.subr.mxu0 0.0
    %1208 = vmatpush1.msra.mxu0 %v1088
    %1209 = vmatprep.subr.mxu0 0.0
    %1210 = vmatpush1.msra.mxu0 %v1087
    %1211 = vmatprep.subr.mxu0 0.0
    %1212 = vmatpush1.msra.mxu0 %v1086
    %1213 = vmatprep.subr.mxu0 0.0
    %1214 = vmatpush1.msra.mxu0 %v1085
    %1215 = vmatprep.subr.mxu0 0.0
    %1216 = vmatpush1.msra.mxu0 %v1084
    %1217 = vmatprep.subr.mxu0 0.0
    %1218 = vmatpush1.msra.mxu0 %v1083
    %1219 = vmatprep.subr.mxu0 0.0
    %1220 = vmatpush1.msra.mxu0 %v1082
    %1221 = vmatprep.subr.mxu0 0.0
    %1222 = vmatpush1.msra.mxu0 %v1081
    %1223 = vmatprep.subr.mxu0 0.0
    %1224 = vmatpush1.msra.mxu0 %v1080
    %1225 = vmatprep.subr.mxu0 0.0
    %1226 = vmatpush1.msra.mxu0 %v1079
    %1227 = vmatprep.subr.mxu0 0.0
    %1228 = vmatpush1.msra.mxu0 %v1078
    %1229 = vmatprep.subr.mxu0 0.0
    %1230 = vmatpush2.msra.mxu0 0.0
    %1231 = vmatprep.subr.mxu0 0.0
    %1232 = vmatpush2.msra.mxu0 0.0
    %1233 = vmatprep.subr.mxu0 0.0
    %1234 = vmatpush2.msra.mxu0 0.0
    %1235 = vmatprep.subr.mxu0 0.0
    %1236 = vmatpush2.msra.mxu0 0.0
    %1237 = vmatprep.subr.mxu0 0.0
    %1238 = vmatpush2.msra.mxu0 0.0
    %1239 = vmatprep.subr.mxu0 0.0
    %1240 = vmatpush2.msra.mxu0 0.0
    %1241 = vmatprep.subr.mxu0 0.0
    %1242 = vmatpush2.msra.mxu0 0.0
    %1243 = vmatprep.subr.mxu0 0.0
    %1244 = vmatpush2.msra.mxu0 0.0
    %1245 = vmatprep.subr.mxu0 0.0
    %1246 = vmatpush2.msra.mxu0 0.0
    %1247 = vmatprep.subr.mxu0 0.0
    %1248 = vmatpush2.msra.mxu0 0.0
    %1249 = vmatprep.subr.mxu0 0.0
    %1250 = vmatpush2.msra.mxu0 0.0
    %1251 = vmatprep.subr.mxu0 0.0
    %1252 = vmatpush2.msra.mxu0 0.0
    %1253 = vmatprep.subr.mxu0 0.0
    %1254 = vmatpush2.msra.mxu0 0.0
    %1255 = vmatprep.subr.mxu0 0.0
    %1256 = vmatpush2.msra.mxu0 0.0
    %1257 = vmatprep.subr.mxu0 0.0
    %1258 = vmatpush2.msra.mxu0 0.0
    %1259 = vmatprep.subr.mxu0 0.0
    %1260 = vmatpush2.msra.mxu0 0.0
    %1261 = vmatprep.mubr.f32.mxu0 0.0
    %1262 = vmatmul.mubr.f32.gmra.mxu0 %v1196
    %v1263 = vpop.f32.mrf.mxu0
    %v1264 = vadd.f32 0.0, %v1263
    %v1265 = vpop.f32.mrf.mxu0
    %1266 = vdwg.mxu0
    %v1267 = vmul.f32 %v1264, %v549
    %v1268 = vadd.f32 %v1267, 1e-05
    %v1269 = vrsqrt.pop %v1268
    %v1270 = vmul.f32 %v1269, %v1094
    %v1271 = vlaneseq
    %v1272 = vshrl.u32 %v1271, 7
    %v1273 = vsub.s32 0, %v1272
    %v1274 = vrot.slane %v1270, %v1273
    %v1275 = vmul.f32 %v1180, %v1274
    %v1276 = vmul.f32 %v1181, %v1274
    %v1277 = vmul.f32 %v1182, %v1274
    %v1278 = vmul.f32 %v1183, %v1274
    %v1280 = vlaneseq
    %v1281 = vshrl.u32 %v1280, 7
    %v1282 = vsub.s32 0, %v1281
    %v1283 = vrot.slane %v1095, %v1282
    %v1285 = vadd.f32 %v1275, %v1283
    %v1286 = vadd.f32 %v1276, %v1283
    %v1287 = vadd.f32 %v1277, %v1283
    %v1288 = vadd.f32 %v1278, %v1283
    %1289 = vst [vmem:[#allocation13] sm:$0xff] %v1285
    %1290 = vst [vmem:[#allocation13 + $0x8] sm:$0xff] %v1286
    %1291 = vst [vmem:[#allocation13 + $0x10] sm:$0xff] %v1287
    %1292 = vst [vmem:[#allocation13 + $0x18] sm:$0xff] %v1288
    // Predicated region
    $region66: #{tpu_custom_call.1} parent=1 // pred_check
      _
    $region67: #{tpu_custom_call.1} parent=1 // pred_check_branch
      %1294 = sbr.rel (0) target = $region69
    $region68: #{tpu_custom_call.1} parent=1 // pred_region
      %s1296 = ssub.s32 512, 512
      %1297 = vsyncadd [#allocation6], %s1296
      %s1298 = sshll.u32 [#allocation13], 4
      %s1299 = int_to_ptr.vmem [resolvable:$true] %s1298
      %1304 = dma.vmem_to_hbm [thread:$0]  %s1299, 512, %s11, [#allocation6], 128, 128, 8
    $region69: #{tpu_custom_call.1} parent=1 // pred_fallthru
      _
    // Predicated region
    $region70: #{tpu_custom_call.1} parent=1 // pred_check
      _
    $region71: #{tpu_custom_call.1} parent=1 // pred_check_branch
      %1306 = sbr.rel (0) target = $region73
    $region72: #{tpu_custom_call.1} parent=1 // pred_region
      %1307 = dma.done [#allocation6], 512
    $region73: #{tpu_custom_call.1} parent=1 // pred_fallthru
      _
    %1308 = vsyncpa [#allocation5], 1
    %1309 = vsyncpa [#allocation8], 1
    %1310 = vsyncpa [#allocation11], 1
    %1311 = vsyncpa [#allocation6], 1

</llo_original>
